<compile_context>
chip_gen: v7x
topology: tpu7x:2x2x1
jax: 0.10.0
libtpu: 0.0.40
codegen_flags: <defaults>
</compile_context>

<pallas_src>
import jax
import jax.numpy as jnp
from jax.experimental import pallas as pl
from jax.experimental.pallas import tpu as pltpu


VMEM_LIMIT_BYTES = 32 * 1024 * 1024  # half of v7x's 64 MiB physical VMEM; safe on v5e/v6e.


def se_mask_kernel(x_ref, w1t_ref, w2t_ref, cmask_ref, hwmask_ref, o_ref):
    # x block: (Bb, C, HW).  All math in f32 regardless of I/O dtype.
    xf = x_ref[...].astype(jnp.float32)

    # --- SEBlock: global average pool over the spatial (lane) axis, f32 acc ---
    pooled = jnp.mean(xf, axis=-1)                          # (Bb, C)

    cr = w1t_ref.shape[1]
    w1t = w1t_ref[...].astype(jnp.float32)                  # (C, Cr)
    w2t = w2t_ref[...].astype(jnp.float32)                  # (Cr, C)

    if cr <= 8:
        # Degenerate-N/K matmuls (Cr = C // 16, e.g. 2): MXU would be <2%
        # utilized and add push/pop latency on the critical path, so do them on
        # the VPU (broadcast FMAs) + XLU (row-sum reductions) instead.
        h1_cols = [
            jnp.sum(pooled * w1t[:, j][None, :], axis=-1, keepdims=True)
            for j in range(cr)
        ]
        h1 = jnp.maximum(jnp.concatenate(h1_cols, axis=-1), 0.0)   # (Bb, Cr)
        y = h1[:, 0:1] * w2t[0][None, :]
        for j in range(1, cr):
            y = y + h1[:, j : j + 1] * w2t[j][None, :]              # (Bb, C)
    else:
        # Fall back to the MXU when the hidden width is actually MXU-sized.
        h1 = jnp.maximum(
            jnp.dot(pooled, w1t, preferred_element_type=jnp.float32), 0.0)
        y = jnp.dot(h1, w2t, preferred_element_type=jnp.float32)

    # --- MaskBlock channel mask fused into the per-(batch, channel) gate ---
    g = jax.nn.sigmoid(y) * cmask_ref[...].astype(jnp.float32)      # (Bb, C)

    # Epilogue: gate broadcast over HW lanes, combined h*w mask broadcast over
    # (Bb, C) -> exactly two broadcast vmuls per output vreg.
    hw = hwmask_ref[...].astype(jnp.float32)                        # (1, 1, HW)
    o_ref[...] = (xf * g[:, :, None] * hw).astype(o_ref.dtype)


def _choose_block_b(B, C, HW, itemsize, *,
                    target_block_bytes=4 << 20, min_split_bytes=2 << 20):
    """Batches per grid step.

    Small working sets run as ONE grid step: v5e/v6e have a single TensorCore,
    so extra 'parallel' steps are pure ~0.35 us/step overhead, and even on v7x
    (2 TCs) splitting only pays off once there is >~1 MiB of work per core.
    Large problems use ~target_block_bytes blocks with >= 2 parallel steps so
    both v7x TensorCores get work.
    """
    per_batch = max(C * HW * itemsize, 1)
    total = B * per_batch
    if B == 1 or total <= min_split_bytes:
        bb = B
    else:
        bb = max(1, min(B, target_block_bytes // per_batch))
        bb = min(bb, max(1, B // 2))          # >= 2 parallel steps (v7x megacore)
    while B % bb:
        bb -= 1
    return bb


def se_mask_block(x_nchw, w1, w2, c_mask, h_mask, w_mask, *,
                  block_b=None, vmem_limit_bytes=VMEM_LIMIT_BYTES):
    """x_nchw: (B, C, H, W), any float dtype (f32 or bf16).  Returns same shape/dtype."""
    B, C, H, W = x_nchw.shape
    HW = H * W
    CR = w1.shape[0]

    # Host-side glue (tiny, layout only): flatten spatial, pre-transpose weights,
    # pre-combine the h and w masks into one lane-dense (1, 1, HW) row.
    x_flat = x_nchw.reshape(B, C, HW)
    w1t = w1.T.astype(jnp.float32)                                   # (C, Cr)
    w2t = w2.T.astype(jnp.float32)                                   # (Cr, C)
    cmask_row = c_mask.reshape(1, C).astype(jnp.float32)             # (1, C)
    hw_mask = (h_mask.reshape(H, 1) * w_mask.reshape(1, W)).reshape(1, 1, HW)
    hw_mask = hw_mask.astype(jnp.float32)                            # (1, 1, HW)

    itemsize = jnp.dtype(x_nchw.dtype).itemsize
    if block_b is None:
        block_b = _choose_block_b(B, C, HW, itemsize)
    assert B % block_b == 0, "block_b must divide B"

    # Generation-aware VMEM guard: x block + out block, each double-buffered by
    # the pipeline, plus the (possibly double-buffered) constant operands.
    block_bytes = block_b * C * HW * itemsize
    const_bytes = 4 * (w1t.size + w2t.size + cmask_row.size + hw_mask.size)
    if 4 * block_bytes + 2 * const_bytes > vmem_limit_bytes:
        # TODO(synk): for shapes where a single-batch slab alone exceeds the
        # budget, add an HW-split grid axis ('arbitrary') with a pl.when-
        # initialized pooled accumulator instead of failing.
        raise ValueError(
            f"SEMaskBlock block of {block_bytes} bytes (block_b={block_b}) does "
            f"not fit the {vmem_limit_bytes}-byte VMEM budget; reduce C*H*W, "
            f"lower block_b, or add an HW-split grid axis.")

    grid = (B // block_b,)

    def build(single_buffer_consts):
        def const_spec(shape):
            idx_map = lambda b: (0,) * len(shape)
            if single_buffer_consts:
                # Constant index_map -> fetched once; double-buffering it only
                # wastes VMEM and a DMA window.
                return pl.BlockSpec(shape, idx_map, pipeline_mode=pl.Buffered(1))
            return pl.BlockSpec(shape, idx_map)

        return pl.pallas_call(
            se_mask_kernel,
            out_shape=jax.ShapeDtypeStruct((B, C, HW), x_nchw.dtype),
            grid_spec=pltpu.PrefetchScalarGridSpec(
                num_scalar_prefetch=0,
                grid=grid,
                in_specs=[
                    pl.BlockSpec((block_b, C, HW), lambda b: (b, 0, 0)),   # x
                    const_spec((C, CR)),                                   # W1^T
                    const_spec((CR, C)),                                   # W2^T
                    const_spec((1, C)),                                    # channel mask
                    const_spec((1, 1, HW)),                                # combined h*w mask
                ],
                out_specs=pl.BlockSpec((block_b, C, HW), lambda b: (b, 0, 0)),
            ),
            compiler_params=pltpu.CompilerParams(
                dimension_semantics=("parallel",),
                vmem_limit_bytes=vmem_limit_bytes,
            ),
        )

    try:
        out_flat = build(True)(x_flat, w1t, w2t, cmask_row, hw_mask)
    except Exception:
        # pl.Buffered(1) on the constant operands is only a minor VMEM/DMA
        # saving; fall back to default double-buffering if this jax version
        # rejects single-buffered BlockSpecs.
        out_flat = build(False)(x_flat, w1t, w2t, cmask_row, hw_mask)

    return out_flat.reshape(B, C, H, W)


def reference_forward(x, w1, w2, c_mask, h_mask, w_mask):
    """Pure-JAX replica of the PyTorch SEMaskBlock.forward (NCHW, f32)."""
    y = jnp.mean(x, axis=(2, 3))                 # (b, c)  adaptive avg pool -> 1x1
    y = jnp.maximum(y @ w1.T, 0.0)               # Linear(C, C//r, bias=False) + ReLU
    y = jax.nn.sigmoid(y @ w2.T)                 # Linear(C//r, C, bias=False) + Sigmoid
    x = x * y[:, :, None, None]                  # SE scaling
    x = x * c_mask.reshape(1, -1, 1, 1)          # MaskBlock
    x = x * h_mask.reshape(1, 1, -1, 1)
    x = x * w_mask.reshape(1, 1, 1, -1)
    return x


if __name__ == "__main__":
    # SEMaskBlock(channel=32, shape=(32, 16, 16)), reduction=16 -> hidden Cr = 2.
    # H*W = 256 keeps the spatial/lane axis a multiple of 128 (lane-dense stores).
    B, C, H, W = 8, 32, 16, 16
    R = 16
    CR = C // R

    key = jax.random.PRNGKey(0)
    kx, k1, k2, kc, kh, kw = jax.random.split(key, 6)

    x = jax.random.normal(kx, (B, C, H, W), dtype=jnp.float32)

    # Parameter shapes from the module:
    #   SEBlock.fc[0].weight : (C//R, C), SEBlock.fc[2].weight : (C, C//R)
    #   MaskBlock.c/h/w      : (1, C), (1, H), (1, W)   (init ones; perturbed here
    #   so the mask path is actually exercised by the correctness check).
    w1 = jax.random.normal(k1, (CR, C), dtype=jnp.float32) * 0.1
    w2 = jax.random.normal(k2, (C, CR), dtype=jnp.float32) * 0.1
    c_mask = jnp.ones((1, C), jnp.float32) + 0.05 * jax.random.normal(kc, (1, C), jnp.float32)
    h_mask = jnp.ones((1, H), jnp.float32) + 0.05 * jax.random.normal(kh, (1, H), jnp.float32)
    w_mask = jnp.ones((1, W), jnp.float32) + 0.05 * jax.random.normal(kw, (1, W), jnp.float32)

    # f32 I/O path (matches PyTorch float32 semantics).
    out = jax.block_until_ready(se_mask_block(x, w1, w2, c_mask, h_mask, w_mask))
    ref = reference_forward(x, w1, w2, c_mask, h_mask, w_mask)
    assert out.shape == (B, C, H, W)
    assert out.dtype == jnp.float32
    assert jnp.allclose(out, ref, atol=1e-5, rtol=1e-5), "f32 mismatch vs reference"

    # bf16 I/O path: half the HBM traffic (kernel is mem-bound); pooled mean and
    # gate still accumulate in f32, only the final store is bf16.
    x_bf16 = x.astype(jnp.bfloat16)
    out_bf16 = jax.block_until_ready(se_mask_block(x_bf16, w1, w2, c_mask, h_mask, w_mask))
    ref_bf16 = reference_forward(x_bf16.astype(jnp.float32), w1, w2, c_mask, h_mask, w_mask)
    assert out_bf16.dtype == jnp.bfloat16
    assert jnp.allclose(out_bf16.astype(jnp.float32), ref_bf16, atol=3e-2, rtol=3e-2), \
        "bf16 mismatch vs reference"

    print("KERNEL_OK")
</pallas_src>

<mosaic_0001>
module attributes {stable_mosaic.version = 11 : i64} {
  func.func @se_mask_kernel(%arg0: i32, %arg1: memref<8x32x256xf32, #tpu.memory_space<vmem>>, %arg2: memref<32x2xf32, #tpu.memory_space<vmem>>, %arg3: memref<2x32xf32, #tpu.memory_space<vmem>>, %arg4: memref<1x32xf32, #tpu.memory_space<vmem>>, %arg5: memref<1x1x256xf32, #tpu.memory_space<vmem>>, %arg6: memref<8x32x256xf32, #tpu.memory_space<vmem>>) attributes {dimension_semantics = [#tpu.dimension_semantics<parallel>], iteration_bounds = array<i64: 1>, scalar_prefetch = 0 : i64, scratch_operands = 0 : i64, tpu.core_type = #tpu.core_type<tc>, window_params = [{transform_indices = @transform_0, window_bounds = array<i64: 8, 32, 256>}, {pipeline_mode = #tpu.pipeline_mode<synchronous>, transform_indices = @transform_1, window_bounds = array<i64: 32, 2>}, {pipeline_mode = #tpu.pipeline_mode<synchronous>, transform_indices = @transform_2, window_bounds = array<i64: 2, 32>}, {pipeline_mode = #tpu.pipeline_mode<synchronous>, transform_indices = @transform_3, window_bounds = array<i64: 1, 32>}, {pipeline_mode = #tpu.pipeline_mode<synchronous>, transform_indices = @transform_4, window_bounds = array<i64: 1, 1, 256>}, {transform_indices = @transform_5, window_bounds = array<i64: 8, 32, 256>}]} {
    %c0 = arith.constant 0 : index
    %c0_0 = arith.constant 0 : index
    %c0_1 = arith.constant 0 : index
    %0 = vector.load %arg1[%c0, %c0_0, %c0_1] : memref<8x32x256xf32, #tpu.memory_space<vmem>>, vector<8x32x256xf32>
    %cst = arith.constant dense<0.000000e+00> : vector<8x32xf32>
    %1 = vector.multi_reduction <add>, %0, %cst [2] : vector<8x32x256xf32> to vector<8x32xf32>
    %cst_2 = arith.constant 2.560000e+02 : f32
    %2 = vector.broadcast %cst_2 : f32 to vector<8x32xf32>
    %3 = arith.divf %1, %2 : vector<8x32xf32>
    %c0_3 = arith.constant 0 : index
    %c0_4 = arith.constant 0 : index
    %4 = vector.load %arg2[%c0_3, %c0_4] : memref<32x2xf32, #tpu.memory_space<vmem>>, vector<32x2xf32>
    %c0_5 = arith.constant 0 : index
    %c0_6 = arith.constant 0 : index
    %5 = vector.load %arg3[%c0_5, %c0_6] : memref<2x32xf32, #tpu.memory_space<vmem>>, vector<2x32xf32>
    %6 = vector.extract_strided_slice %4 {offsets = [0, 0], sizes = [32, 1], strides = [1, 1]} : vector<32x2xf32> to vector<32x1xf32>
    %7 = vector.shape_cast %6 : vector<32x1xf32> to vector<32xf32>
    %8 = vector.shape_cast %7 : vector<32xf32> to vector<1x32xf32>
    %9 = vector.broadcast %8 : vector<1x32xf32> to vector<8x32xf32>
    %10 = arith.mulf %3, %9 : vector<8x32xf32>
    %cst_7 = arith.constant dense<0.000000e+00> : vector<8xf32>
    %11 = vector.multi_reduction <add>, %10, %cst_7 [1] : vector<8x32xf32> to vector<8xf32>
    %12 = vector.shape_cast %11 : vector<8xf32> to vector<8x1xf32>
    %13 = vector.extract_strided_slice %4 {offsets = [0, 1], sizes = [32, 1], strides = [1, 1]} : vector<32x2xf32> to vector<32x1xf32>
    %14 = vector.shape_cast %13 : vector<32x1xf32> to vector<32xf32>
    %15 = vector.shape_cast %14 : vector<32xf32> to vector<1x32xf32>
    %16 = vector.broadcast %15 : vector<1x32xf32> to vector<8x32xf32>
    %17 = arith.mulf %3, %16 : vector<8x32xf32>
    %cst_8 = arith.constant dense<0.000000e+00> : vector<8xf32>
    %18 = vector.multi_reduction <add>, %17, %cst_8 [1] : vector<8x32xf32> to vector<8xf32>
    %19 = vector.shape_cast %18 : vector<8xf32> to vector<8x1xf32>
    %20 = tpu.concatenate %12, %19 in 1 : vector<8x1xf32>, vector<8x1xf32> -> vector<8x2xf32>
    %cst_9 = arith.constant 0.000000e+00 : f32
    %21 = vector.broadcast %cst_9 : f32 to vector<8x2xf32>
    %22 = arith.maximumf %20, %21 : vector<8x2xf32>
    %23 = vector.extract_strided_slice %22 {offsets = [0, 0], sizes = [8, 1], strides = [1, 1]} : vector<8x2xf32> to vector<8x1xf32>
    %24 = vector.extract_strided_slice %5 {offsets = [0, 0], sizes = [1, 32], strides = [1, 1]} : vector<2x32xf32> to vector<1x32xf32>
    %25 = vector.shape_cast %24 : vector<1x32xf32> to vector<32xf32>
    %26 = vector.shape_cast %25 : vector<32xf32> to vector<1x32xf32>
    %27 = vector.broadcast %23 : vector<8x1xf32> to vector<8x32xf32>
    %28 = vector.broadcast %26 : vector<1x32xf32> to vector<8x32xf32>
    %29 = arith.mulf %27, %28 : vector<8x32xf32>
    %30 = vector.extract_strided_slice %22 {offsets = [0, 1], sizes = [8, 1], strides = [1, 1]} : vector<8x2xf32> to vector<8x1xf32>
    %31 = vector.extract_strided_slice %5 {offsets = [1, 0], sizes = [1, 32], strides = [1, 1]} : vector<2x32xf32> to vector<1x32xf32>
    %32 = vector.shape_cast %31 : vector<1x32xf32> to vector<32xf32>
    %33 = vector.shape_cast %32 : vector<32xf32> to vector<1x32xf32>
    %34 = vector.broadcast %30 : vector<8x1xf32> to vector<8x32xf32>
    %35 = vector.broadcast %33 : vector<1x32xf32> to vector<8x32xf32>
    %36 = arith.mulf %34, %35 : vector<8x32xf32>
    %37 = arith.addf %29, %36 : vector<8x32xf32>
    %38 = arith.negf %37 : vector<8x32xf32>
    %39 = math.exp %38 : vector<8x32xf32>
    %cst_10 = arith.constant 1.000000e+00 : f32
    %40 = vector.broadcast %cst_10 : f32 to vector<8x32xf32>
    %41 = arith.addf %40, %39 : vector<8x32xf32>
    %42 = arith.divf %40, %41 : vector<8x32xf32>
    %c0_11 = arith.constant 0 : index
    %c0_12 = arith.constant 0 : index
    %43 = vector.load %arg4[%c0_11, %c0_12] : memref<1x32xf32, #tpu.memory_space<vmem>>, vector<1x32xf32>
    %44 = vector.broadcast %43 : vector<1x32xf32> to vector<8x32xf32>
    %45 = arith.mulf %42, %44 : vector<8x32xf32>
    %c0_13 = arith.constant 0 : index
    %c0_14 = arith.constant 0 : index
    %c0_15 = arith.constant 0 : index
    %46 = vector.load %arg5[%c0_13, %c0_14, %c0_15] : memref<1x1x256xf32, #tpu.memory_space<vmem>>, vector<1x1x256xf32>
    %47 = vector.shape_cast %45 : vector<8x32xf32> to vector<8x32x1xf32>
    %48 = vector.broadcast %47 : vector<8x32x1xf32> to vector<8x32x256xf32>
    %49 = arith.mulf %0, %48 : vector<8x32x256xf32>
    %50 = vector.broadcast %46 : vector<1x1x256xf32> to vector<8x32x256xf32>
    %51 = arith.mulf %49, %50 : vector<8x32x256xf32>
    %c0_16 = arith.constant 0 : index
    %c0_17 = arith.constant 0 : index
    %c0_18 = arith.constant 0 : index
    %52 = vector.load %arg6[%c0_16, %c0_17, %c0_18] : memref<8x32x256xf32, #tpu.memory_space<vmem>>, vector<8x32x256xf32>
    tpu.vector_store %arg6[%c0_16, %c0_17, %c0_18], %51 {strides = array<i32>} : memref<8x32x256xf32, #tpu.memory_space<vmem>>, vector<8x32x256xf32>,
    return
  }
  func.func @transform_0(%arg0: i32) -> (i32, i32, i32) {
    %c0_i32 = arith.constant 0 : i32
    %c0_i32_0 = arith.constant 0 : i32
    %c0_i32_1 = arith.constant 0 : i32
    return %arg0, %c0_i32, %c0_i32_0 : i32, i32, i32
  }
  func.func @transform_1(%arg0: i32) -> (i32, i32) {
    %c0_i32 = arith.constant 0 : i32
    %c0_i32_0 = arith.constant 0 : i32
    %c0_i32_1 = arith.constant 0 : i32
    return %c0_i32, %c0_i32_0 : i32, i32
  }
  func.func @transform_2(%arg0: i32) -> (i32, i32) {
    %c0_i32 = arith.constant 0 : i32
    %c0_i32_0 = arith.constant 0 : i32
    %c0_i32_1 = arith.constant 0 : i32
    return %c0_i32, %c0_i32_0 : i32, i32
  }
  func.func @transform_3(%arg0: i32) -> (i32, i32) {
    %c0_i32 = arith.constant 0 : i32
    %c0_i32_0 = arith.constant 0 : i32
    %c0_i32_1 = arith.constant 0 : i32
    return %c0_i32, %c0_i32_0 : i32, i32
  }
  func.func @transform_4(%arg0: i32) -> (i32, i32, i32) {
    %c0_i32 = arith.constant 0 : i32
    %c0_i32_0 = arith.constant 0 : i32
    %c0_i32_1 = arith.constant 0 : i32
    %c0_i32_2 = arith.constant 0 : i32
    return %c0_i32, %c0_i32_0, %c0_i32_1 : i32, i32, i32
  }
  func.func @transform_5(%arg0: i32) -> (i32, i32, i32) {
    %c0_i32 = arith.constant 0 : i32
    %c0_i32_0 = arith.constant 0 : i32
    %c0_i32_1 = arith.constant 0 : i32
    return %arg0, %c0_i32, %c0_i32_0 : i32, i32, i32
  }
}

module attributes {stable_mosaic.version = 11 : i64} {
  func.func @se_mask_kernel(%arg0: i32, %arg1: memref<8x32x256xf32, #tpu.memory_space<vmem>>, %arg2: memref<32x2xf32, #tpu.memory_space<vmem>>, %arg3: memref<2x32xf32, #tpu.memory_space<vmem>>, %arg4: memref<1x32xf32, #tpu.memory_space<vmem>>, %arg5: memref<1x1x256xf32, #tpu.memory_space<vmem>>, %arg6: memref<8x32x256xf32, #tpu.memory_space<vmem>>) attributes {dimension_semantics = [#tpu.dimension_semantics<parallel>], iteration_bounds = array<i64: 1>, scalar_prefetch = 0 : i64, scratch_operands = 0 : i64, tpu.core_type = #tpu.core_type<tc>, window_params = [{transform_indices = @transform_0, window_bounds = array<i64: 8, 32, 256>}, {pipeline_mode = #tpu.pipeline_mode<synchronous>, transform_indices = @transform_1, window_bounds = array<i64: 32, 2>}, {pipeline_mode = #tpu.pipeline_mode<synchronous>, transform_indices = @transform_2, window_bounds = array<i64: 2, 32>}, {pipeline_mode = #tpu.pipeline_mode<synchronous>, transform_indices = @transform_3, window_bounds = array<i64: 1, 32>}, {pipeline_mode = #tpu.pipeline_mode<synchronous>, transform_indices = @transform_4, window_bounds = array<i64: 1, 1, 256>}, {transform_indices = @transform_5, window_bounds = array<i64: 8, 32, 256>}]} {
    %c0 = arith.constant 0 : index
    %c0_0 = arith.constant 0 : index
    %c0_1 = arith.constant 0 : index
    %0 = vector.load %arg1[%c0, %c0_0, %c0_1] : memref<8x32x256xf32, #tpu.memory_space<vmem>>, vector<8x32x256xf32>
    %cst = arith.constant dense<0.000000e+00> : vector<8x32xf32>
    %1 = vector.multi_reduction <add>, %0, %cst [2] : vector<8x32x256xf32> to vector<8x32xf32>
    %cst_2 = arith.constant 2.560000e+02 : f32
    %2 = vector.broadcast %cst_2 : f32 to vector<8x32xf32>
    %3 = arith.divf %1, %2 : vector<8x32xf32>
    %c0_3 = arith.constant 0 : index
    %c0_4 = arith.constant 0 : index
    %4 = vector.load %arg2[%c0_3, %c0_4] : memref<32x2xf32, #tpu.memory_space<vmem>>, vector<32x2xf32>
    %c0_5 = arith.constant 0 : index
    %c0_6 = arith.constant 0 : index
    %5 = vector.load %arg3[%c0_5, %c0_6] : memref<2x32xf32, #tpu.memory_space<vmem>>, vector<2x32xf32>
    %6 = vector.extract_strided_slice %4 {offsets = [0, 0], sizes = [32, 1], strides = [1, 1]} : vector<32x2xf32> to vector<32x1xf32>
    %7 = vector.shape_cast %6 : vector<32x1xf32> to vector<32xf32>
    %8 = vector.shape_cast %7 : vector<32xf32> to vector<1x32xf32>
    %9 = vector.broadcast %8 : vector<1x32xf32> to vector<8x32xf32>
    %10 = arith.mulf %3, %9 : vector<8x32xf32>
    %cst_7 = arith.constant dense<0.000000e+00> : vector<8xf32>
    %11 = vector.multi_reduction <add>, %10, %cst_7 [1] : vector<8x32xf32> to vector<8xf32>
    %12 = vector.shape_cast %11 : vector<8xf32> to vector<8x1xf32>
    %13 = vector.extract_strided_slice %4 {offsets = [0, 1], sizes = [32, 1], strides = [1, 1]} : vector<32x2xf32> to vector<32x1xf32>
    %14 = vector.shape_cast %13 : vector<32x1xf32> to vector<32xf32>
    %15 = vector.shape_cast %14 : vector<32xf32> to vector<1x32xf32>
    %16 = vector.broadcast %15 : vector<1x32xf32> to vector<8x32xf32>
    %17 = arith.mulf %3, %16 : vector<8x32xf32>
    %cst_8 = arith.constant dense<0.000000e+00> : vector<8xf32>
    %18 = vector.multi_reduction <add>, %17, %cst_8 [1] : vector<8x32xf32> to vector<8xf32>
    %19 = vector.shape_cast %18 : vector<8xf32> to vector<8x1xf32>
    %20 = tpu.concatenate %12, %19 in 1 : vector<8x1xf32>, vector<8x1xf32> -> vector<8x2xf32>
    %cst_9 = arith.constant 0.000000e+00 : f32
    %21 = vector.broadcast %cst_9 : f32 to vector<8x2xf32>
    %22 = arith.maximumf %20, %21 : vector<8x2xf32>
    %23 = vector.extract_strided_slice %22 {offsets = [0, 0], sizes = [8, 1], strides = [1, 1]} : vector<8x2xf32> to vector<8x1xf32>
    %24 = vector.extract_strided_slice %5 {offsets = [0, 0], sizes = [1, 32], strides = [1, 1]} : vector<2x32xf32> to vector<1x32xf32>
    %25 = vector.shape_cast %24 : vector<1x32xf32> to vector<32xf32>
    %26 = vector.shape_cast %25 : vector<32xf32> to vector<1x32xf32>
    %27 = vector.broadcast %23 : vector<8x1xf32> to vector<8x32xf32>
    %28 = vector.broadcast %26 : vector<1x32xf32> to vector<8x32xf32>
    %29 = arith.mulf %27, %28 : vector<8x32xf32>
    %30 = vector.extract_strided_slice %22 {offsets = [0, 1], sizes = [8, 1], strides = [1, 1]} : vector<8x2xf32> to vector<8x1xf32>
    %31 = vector.extract_strided_slice %5 {offsets = [1, 0], sizes = [1, 32], strides = [1, 1]} : vector<2x32xf32> to vector<1x32xf32>
    %32 = vector.shape_cast %31 : vector<1x32xf32> to vector<32xf32>
    %33 = vector.shape_cast %32 : vector<32xf32> to vector<1x32xf32>
    %34 = vector.broadcast %30 : vector<8x1xf32> to vector<8x32xf32>
    %35 = vector.broadcast %33 : vector<1x32xf32> to vector<8x32xf32>
    %36 = arith.mulf %34, %35 : vector<8x32xf32>
    %37 = arith.addf %29, %36 : vector<8x32xf32>
    %38 = arith.negf %37 : vector<8x32xf32>
    %39 = math.exp %38 : vector<8x32xf32>
    %cst_10 = arith.constant 1.000000e+00 : f32
    %40 = vector.broadcast %cst_10 : f32 to vector<8x32xf32>
    %41 = arith.addf %40, %39 : vector<8x32xf32>
    %42 = arith.divf %40, %41 : vector<8x32xf32>
    %c0_11 = arith.constant 0 : index
    %c0_12 = arith.constant 0 : index
    %43 = vector.load %arg4[%c0_11, %c0_12] : memref<1x32xf32, #tpu.memory_space<vmem>>, vector<1x32xf32>
    %44 = vector.broadcast %43 : vector<1x32xf32> to vector<8x32xf32>
    %45 = arith.mulf %42, %44 : vector<8x32xf32>
    %c0_13 = arith.constant 0 : index
    %c0_14 = arith.constant 0 : index
    %c0_15 = arith.constant 0 : index
    %46 = vector.load %arg5[%c0_13, %c0_14, %c0_15] : memref<1x1x256xf32, #tpu.memory_space<vmem>>, vector<1x1x256xf32>
    %47 = vector.shape_cast %45 : vector<8x32xf32> to vector<8x32x1xf32>
    %48 = vector.broadcast %47 : vector<8x32x1xf32> to vector<8x32x256xf32>
    %49 = arith.mulf %0, %48 : vector<8x32x256xf32>
    %50 = vector.broadcast %46 : vector<1x1x256xf32> to vector<8x32x256xf32>
    %51 = arith.mulf %49, %50 : vector<8x32x256xf32>
    %c0_16 = arith.constant 0 : index
    %c0_17 = arith.constant 0 : index
    %c0_18 = arith.constant 0 : index
    %52 = vector.load %arg6[%c0_16, %c0_17, %c0_18] : memref<8x32x256xf32, #tpu.memory_space<vmem>>, vector<8x32x256xf32>
    tpu.vector_store %arg6[%c0_16, %c0_17, %c0_18], %51 {strides = array<i32>} : memref<8x32x256xf32, #tpu.memory_space<vmem>>, vector<8x32x256xf32>,
    return
  }
  func.func @transform_0(%arg0: i32) -> (i32, i32, i32) {
    %c0_i32 = arith.constant 0 : i32
    %c0_i32_0 = arith.constant 0 : i32
    %c0_i32_1 = arith.constant 0 : i32
    return %arg0, %c0_i32, %c0_i32_0 : i32, i32, i32
  }
  func.func @transform_1(%arg0: i32) -> (i32, i32) {
    %c0_i32 = arith.constant 0 : i32
    %c0_i32_0 = arith.constant 0 : i32
    %c0_i32_1 = arith.constant 0 : i32
    return %c0_i32, %c0_i32_0 : i32, i32
  }
  func.func @transform_2(%arg0: i32) -> (i32, i32) {
    %c0_i32 = arith.constant 0 : i32
    %c0_i32_0 = arith.constant 0 : i32
    %c0_i32_1 = arith.constant 0 : i32
    return %c0_i32, %c0_i32_0 : i32, i32
  }
  func.func @transform_3(%arg0: i32) -> (i32, i32) {
    %c0_i32 = arith.constant 0 : i32
    %c0_i32_0 = arith.constant 0 : i32
    %c0_i32_1 = arith.constant 0 : i32
    return %c0_i32, %c0_i32_0 : i32, i32
  }
  func.func @transform_4(%arg0: i32) -> (i32, i32, i32) {
    %c0_i32 = arith.constant 0 : i32
    %c0_i32_0 = arith.constant 0 : i32
    %c0_i32_1 = arith.constant 0 : i32
    %c0_i32_2 = arith.constant 0 : i32
    return %c0_i32, %c0_i32_0, %c0_i32_1 : i32, i32, i32
  }
  func.func @transform_5(%arg0: i32) -> (i32, i32, i32) {
    %c0_i32 = arith.constant 0 : i32
    %c0_i32_0 = arith.constant 0 : i32
    %c0_i32_1 = arith.constant 0 : i32
    return %arg0, %c0_i32, %c0_i32_0 : i32, i32, i32
  }
}

</mosaic_0001>

<llo_original>
// kernel: tpu_custom_call.1
$region0: #{tpu_custom_call.1}
  #allocation0 [shape = 'u32[]', space=smem, size = 0x4, offset = 0x4, fixed_abs, tag = 'smem constant byte address 0x4 - core index']
  #allocation1 [shape = 'u32[144,128]{1,0:T(1,128)}', space=vmem, size = 0x12000, scoped, tag = 'internal scratch']
  %s0 = inlined_call_operand.hbm [shape: f32[8,32,256], index: 0, kind: input, shape index: {}]
  %s1 = inlined_call_operand.vmem [shape: f32[32,2], index: 1, kind: input, shape index: {}]
  %s2 = inlined_call_operand.vmem [shape: f32[2,32], index: 2, kind: input, shape index: {}]
  %s3 = inlined_call_operand.vmem [shape: f32[1,32], index: 3, kind: input, shape index: {}]
  %s4 = inlined_call_operand.vmem [shape: f32[1,1,256], index: 4, kind: input, shape index: {}]
  %s5 = inlined_call_operand.hbm [shape: f32[8,32,256], index: 5, kind: output, shape index: {}]
  %s6 = sld [smem:[#allocation0]]
  $region34: #{tpu_custom_call.1} parent=0
    _
  %s8 = ssub.s32 1, %s6
  %s9 = scalar_select 0, %s8, %s6
  $region1: #{tpu_custom_call.1} parent=0
    #allocation2 [shape = 'u8[262144]{0}', space=vmem, size = 0x40000, scoped, tag = 'input window, operand 0, single buffered']
    #allocation3 [shape = 's32[1]{0}', space=sflag, size = 0x4, scoped, tag = 'scoped memory for tpu_custom_call.1']
    #allocation4 [shape = 's32[1]{0}', space=sflag, size = 0x4, scoped, tag = 'scoped memory for tpu_custom_call.1']
    #allocation5 [shape = 'u8[262144]{0}', space=vmem, size = 0x40000, scoped, tag = 'output window, operand 0, single buffered']
    %10 = vsyncpa [#allocation3], 0
    %11 = vsyncpa [#allocation4], 0
    // Predicated region
    $region2: #{tpu_custom_call.1} parent=1 // pred_check
      _
    $region3: #{tpu_custom_call.1} parent=1 // pred_check_branch
      %13 = sbr.rel (0) target = $region5
    $region4: #{tpu_custom_call.1} parent=1 // pred_region
      %s15 = ssub.s32 8192, 8192
      %16 = vsyncadd [#allocation3], %s15
      %s17 = sshll.u32 [#allocation2], 4
      %s18 = int_to_ptr.vmem [resolvable:$true] %s17
      %23 = dma.hbm_to_vmem [thread:$0]  %s0, 8192, %s18, [#allocation3], 256, 256, 16
    $region5: #{tpu_custom_call.1} parent=1 // pred_fallthru
      _
    // Predicated region
    $region6: #{tpu_custom_call.1} parent=1 // pred_check
      _
    $region7: #{tpu_custom_call.1} parent=1 // pred_check_branch
      %25 = sbr.rel (0) target = $region9
    $region8: #{tpu_custom_call.1} parent=1 // pred_region
      _
    $region9: #{tpu_custom_call.1} parent=1 // pred_fallthru
      _
    // Predicated region
    $region10: #{tpu_custom_call.1} parent=1 // pred_check
      _
    $region11: #{tpu_custom_call.1} parent=1 // pred_check_branch
      %27 = sbr.rel (0) target = $region13
    $region12: #{tpu_custom_call.1} parent=1 // pred_region
      _
    $region13: #{tpu_custom_call.1} parent=1 // pred_fallthru
      _
    // Predicated region
    $region14: #{tpu_custom_call.1} parent=1 // pred_check
      _
    $region15: #{tpu_custom_call.1} parent=1 // pred_check_branch
      %29 = sbr.rel (0) target = $region17
    $region16: #{tpu_custom_call.1} parent=1 // pred_region
      _
    $region17: #{tpu_custom_call.1} parent=1 // pred_fallthru
      _
    // Predicated region
    $region18: #{tpu_custom_call.1} parent=1 // pred_check
      _
    $region19: #{tpu_custom_call.1} parent=1 // pred_check_branch
      %31 = sbr.rel (0) target = $region21
    $region20: #{tpu_custom_call.1} parent=1 // pred_region
      _
    $region21: #{tpu_custom_call.1} parent=1 // pred_fallthru
      _
    // Predicated region
    $region22: #{tpu_custom_call.1} parent=1 // pred_check
      _
    $region23: #{tpu_custom_call.1} parent=1 // pred_check_branch
      %33 = sbr.rel (0) target = $region25
    $region24: #{tpu_custom_call.1} parent=1 // pred_region
      %34 = dma.done [#allocation3], 8192
    $region25: #{tpu_custom_call.1} parent=1 // pred_fallthru
      _
    %v35 = vld [vmem:[#allocation2] sm:$0xff]
    %v36 = vld [vmem:[#allocation2 + $0x8] sm:$0xff]
    %v37 = vld [vmem:[#allocation2 + $0x10] sm:$0xff]
    %v38 = vld [vmem:[#allocation2 + $0x18] sm:$0xff]
    %v39 = vld [vmem:[#allocation2 + $0x20] sm:$0xff]
    %v40 = vld [vmem:[#allocation2 + $0x28] sm:$0xff]
    %v41 = vld [vmem:[#allocation2 + $0x30] sm:$0xff]
    %v42 = vld [vmem:[#allocation2 + $0x38] sm:$0xff]
    %v43 = vld [vmem:[#allocation2 + $0x40] sm:$0xff]
    %v44 = vld [vmem:[#allocation2 + $0x48] sm:$0xff]
    %v45 = vld [vmem:[#allocation2 + $0x50] sm:$0xff]
    %v46 = vld [vmem:[#allocation2 + $0x58] sm:$0xff]
    %v47 = vld [vmem:[#allocation2 + $0x60] sm:$0xff]
    %v48 = vld [vmem:[#allocation2 + $0x68] sm:$0xff]
    %v49 = vld [vmem:[#allocation2 + $0x70] sm:$0xff]
    %v50 = vld [vmem:[#allocation2 + $0x78] sm:$0xff]
    %v51 = vld [vmem:[#allocation2 + $0x80] sm:$0xff]
    %v52 = vld [vmem:[#allocation2 + $0x88] sm:$0xff]
    %v53 = vld [vmem:[#allocation2 + $0x90] sm:$0xff]
    %v54 = vld [vmem:[#allocation2 + $0x98] sm:$0xff]
    %v55 = vld [vmem:[#allocation2 + $0xa0] sm:$0xff]
    %v56 = vld [vmem:[#allocation2 + $0xa8] sm:$0xff]
    %v57 = vld [vmem:[#allocation2 + $0xb0] sm:$0xff]
    %v58 = vld [vmem:[#allocation2 + $0xb8] sm:$0xff]
    %v59 = vld [vmem:[#allocation2 + $0xc0] sm:$0xff]
    %v60 = vld [vmem:[#allocation2 + $0xc8] sm:$0xff]
    %v61 = vld [vmem:[#allocation2 + $0xd0] sm:$0xff]
    %v62 = vld [vmem:[#allocation2 + $0xd8] sm:$0xff]
    %v63 = vld [vmem:[#allocation2 + $0xe0] sm:$0xff]
    %v64 = vld [vmem:[#allocation2 + $0xe8] sm:$0xff]
    %v65 = vld [vmem:[#allocation2 + $0xf0] sm:$0xff]
    %v66 = vld [vmem:[#allocation2 + $0xf8] sm:$0xff]
    %v67 = vld [vmem:[#allocation2 + $0x100] sm:$0xff]
    %v68 = vld [vmem:[#allocation2 + $0x108] sm:$0xff]
    %v69 = vld [vmem:[#allocation2 + $0x110] sm:$0xff]
    %v70 = vld [vmem:[#allocation2 + $0x118] sm:$0xff]
    %v71 = vld [vmem:[#allocation2 + $0x120] sm:$0xff]
    %v72 = vld [vmem:[#allocation2 + $0x128] sm:$0xff]
    %v73 = vld [vmem:[#allocation2 + $0x130] sm:$0xff]
    %v74 = vld [vmem:[#allocation2 + $0x138] sm:$0xff]
    %v75 = vld [vmem:[#allocation2 + $0x140] sm:$0xff]
    %v76 = vld [vmem:[#allocation2 + $0x148] sm:$0xff]
    %v77 = vld [vmem:[#allocation2 + $0x150] sm:$0xff]
    %v78 = vld [vmem:[#allocation2 + $0x158] sm:$0xff]
    %v79 = vld [vmem:[#allocation2 + $0x160] sm:$0xff]
    %v80 = vld [vmem:[#allocation2 + $0x168] sm:$0xff]
    %v81 = vld [vmem:[#allocation2 + $0x170] sm:$0xff]
    %v82 = vld [vmem:[#allocation2 + $0x178] sm:$0xff]
    %v83 = vld [vmem:[#allocation2 + $0x180] sm:$0xff]
    %v84 = vld [vmem:[#allocation2 + $0x188] sm:$0xff]
    %v85 = vld [vmem:[#allocation2 + $0x190] sm:$0xff]
    %v86 = vld [vmem:[#allocation2 + $0x198] sm:$0xff]
    %v87 = vld [vmem:[#allocation2 + $0x1a0] sm:$0xff]
    %v88 = vld [vmem:[#allocation2 + $0x1a8] sm:$0xff]
    %v89 = vld [vmem:[#allocation2 + $0x1b0] sm:$0xff]
    %v90 = vld [vmem:[#allocation2 + $0x1b8] sm:$0xff]
    %v91 = vld [vmem:[#allocation2 + $0x1c0] sm:$0xff]
    %v92 = vld [vmem:[#allocation2 + $0x1c8] sm:$0xff]
    %v93 = vld [vmem:[#allocation2 + $0x1d0] sm:$0xff]
    %v94 = vld [vmem:[#allocation2 + $0x1d8] sm:$0xff]
    %v95 = vld [vmem:[#allocation2 + $0x1e0] sm:$0xff]
    %v96 = vld [vmem:[#allocation2 + $0x1e8] sm:$0xff]
    %v97 = vld [vmem:[#allocation2 + $0x1f0] sm:$0xff]
    %v98 = vld [vmem:[#allocation2 + $0x1f8] sm:$0xff]
    %v99 = vadd.f32 %v35, %v36
    %100 = vadd.xlane.f32.xlu0 %v99
    %v101 = vpop.xlane.xlu0 %100
    %v102 = vadd.f32 %v37, %v38
    %103 = vadd.xlane.f32.xlu0 %v102
    %v104 = vpop.xlane.xlu0 %103
    %v105 = vadd.f32 %v39, %v40
    %106 = vadd.xlane.f32.xlu0 %v105
    %v107 = vpop.xlane.xlu0 %106
    %v108 = vadd.f32 %v41, %v42
    %109 = vadd.xlane.f32.xlu0 %v108
    %v110 = vpop.xlane.xlu0 %109
    %v111 = vadd.f32 %v43, %v44
    %112 = vadd.xlane.f32.xlu0 %v111
    %v113 = vpop.xlane.xlu0 %112
    %v114 = vadd.f32 %v45, %v46
    %115 = vadd.xlane.f32.xlu0 %v114
    %v116 = vpop.xlane.xlu0 %115
    %v117 = vadd.f32 %v47, %v48
    %118 = vadd.xlane.f32.xlu0 %v117
    %v119 = vpop.xlane.xlu0 %118
    %v120 = vadd.f32 %v49, %v50
    %121 = vadd.xlane.f32.xlu0 %v120
    %v122 = vpop.xlane.xlu0 %121
    %v123 = vadd.f32 %v51, %v52
    %124 = vadd.xlane.f32.xlu0 %v123
    %v125 = vpop.xlane.xlu0 %124
    %v126 = vadd.f32 %v53, %v54
    %127 = vadd.xlane.f32.xlu0 %v126
    %v128 = vpop.xlane.xlu0 %127
    %v129 = vadd.f32 %v55, %v56
    %130 = vadd.xlane.f32.xlu0 %v129
    %v131 = vpop.xlane.xlu0 %130
    %v132 = vadd.f32 %v57, %v58
    %133 = vadd.xlane.f32.xlu0 %v132
    %v134 = vpop.xlane.xlu0 %133
    %v135 = vadd.f32 %v59, %v60
    %136 = vadd.xlane.f32.xlu0 %v135
    %v137 = vpop.xlane.xlu0 %136
    %v138 = vadd.f32 %v61, %v62
    %139 = vadd.xlane.f32.xlu0 %v138
    %v140 = vpop.xlane.xlu0 %139
    %v141 = vadd.f32 %v63, %v64
    %142 = vadd.xlane.f32.xlu0 %v141
    %v143 = vpop.xlane.xlu0 %142
    %v144 = vadd.f32 %v65, %v66
    %145 = vadd.xlane.f32.xlu0 %v144
    %v146 = vpop.xlane.xlu0 %145
    %v147 = vadd.f32 %v67, %v68
    %148 = vadd.xlane.f32.xlu0 %v147
    %v149 = vpop.xlane.xlu0 %148
    %v150 = vadd.f32 %v69, %v70
    %151 = vadd.xlane.f32.xlu0 %v150
    %v152 = vpop.xlane.xlu0 %151
    %v153 = vadd.f32 %v71, %v72
    %154 = vadd.xlane.f32.xlu0 %v153
    %v155 = vpop.xlane.xlu0 %154
    %v156 = vadd.f32 %v73, %v74
    %157 = vadd.xlane.f32.xlu0 %v156
    %v158 = vpop.xlane.xlu0 %157
    %v159 = vadd.f32 %v75, %v76
    %160 = vadd.xlane.f32.xlu0 %v159
    %v161 = vpop.xlane.xlu0 %160
    %v162 = vadd.f32 %v77, %v78
    %163 = vadd.xlane.f32.xlu0 %v162
    %v164 = vpop.xlane.xlu0 %163
    %v165 = vadd.f32 %v79, %v80
    %166 = vadd.xlane.f32.xlu0 %v165
    %v167 = vpop.xlane.xlu0 %166
    %v168 = vadd.f32 %v81, %v82
    %169 = vadd.xlane.f32.xlu0 %v168
    %v170 = vpop.xlane.xlu0 %169
    %v171 = vadd.f32 %v83, %v84
    %172 = vadd.xlane.f32.xlu0 %v171
    %v173 = vpop.xlane.xlu0 %172
    %v174 = vadd.f32 %v85, %v86
    %175 = vadd.xlane.f32.xlu0 %v174
    %v176 = vpop.xlane.xlu0 %175
    %v177 = vadd.f32 %v87, %v88
    %178 = vadd.xlane.f32.xlu0 %v177
    %v179 = vpop.xlane.xlu0 %178
    %v180 = vadd.f32 %v89, %v90
    %181 = vadd.xlane.f32.xlu0 %v180
    %v182 = vpop.xlane.xlu0 %181
    %v183 = vadd.f32 %v91, %v92
    %184 = vadd.xlane.f32.xlu0 %v183
    %v185 = vpop.xlane.xlu0 %184
    %v186 = vadd.f32 %v93, %v94
    %187 = vadd.xlane.f32.xlu0 %v186
    %v188 = vpop.xlane.xlu0 %187
    %v189 = vadd.f32 %v95, %v96
    %190 = vadd.xlane.f32.xlu0 %v189
    %v191 = vpop.xlane.xlu0 %190
    %v192 = vadd.f32 %v97, %v98
    %193 = vadd.xlane.f32.xlu0 %v192
    %v194 = vpop.xlane.xlu0 %193
    %v195 = vrcp.pop 256.0
    %v196 = vmul.f32 %v101, %v195
    %v197 = vmul.f32 %v104, %v195
    %v198 = vmul.f32 %v107, %v195
    %v199 = vmul.f32 %v110, %v195
    %v200 = vmul.f32 %v113, %v195
    %v201 = vmul.f32 %v116, %v195
    %v202 = vmul.f32 %v119, %v195
    %v203 = vmul.f32 %v122, %v195
    %v204 = vmul.f32 %v125, %v195
    %v205 = vmul.f32 %v128, %v195
    %v206 = vmul.f32 %v131, %v195
    %v207 = vmul.f32 %v134, %v195
    %v208 = vmul.f32 %v137, %v195
    %v209 = vmul.f32 %v140, %v195
    %v210 = vmul.f32 %v143, %v195
    %v211 = vmul.f32 %v146, %v195
    %v212 = vmul.f32 %v149, %v195
    %v213 = vmul.f32 %v152, %v195
    %v214 = vmul.f32 %v155, %v195
    %v215 = vmul.f32 %v158, %v195
    %v216 = vmul.f32 %v161, %v195
    %v217 = vmul.f32 %v164, %v195
    %v218 = vmul.f32 %v167, %v195
    %v219 = vmul.f32 %v170, %v195
    %v220 = vmul.f32 %v173, %v195
    %v221 = vmul.f32 %v176, %v195
    %v222 = vmul.f32 %v179, %v195
    %v223 = vmul.f32 %v182, %v195
    %v224 = vmul.f32 %v185, %v195
    %v225 = vmul.f32 %v188, %v195
    %v226 = vmul.f32 %v191, %v195
    %v227 = vmul.f32 %v194, %v195
    %v228 = vld [vmem:[%s1] sm:$0xff]
    %v229 = vld [vmem:[%s1 + $0x8] sm:$0xff]
    %v230 = vld [vmem:[%s1 + $0x10] sm:$0xff]
    %v231 = vld [vmem:[%s1 + $0x18] sm:$0xff]
    %v232 = vld [vmem:[%s2] sm:$0x3]
    %v233 = vmul.f32 %v196, %v228
    %v234 = vmul.f32 %v197, %v229
    %v235 = vmul.f32 %v198, %v230
    %v236 = vmul.f32 %v199, %v231
    %v237 = vmul.f32 %v200, %v228
    %v238 = vmul.f32 %v201, %v229
    %v239 = vmul.f32 %v202, %v230
    %v240 = vmul.f32 %v203, %v231
    %v241 = vmul.f32 %v204, %v228
    %v242 = vmul.f32 %v205, %v229
    %v243 = vmul.f32 %v206, %v230
    %v244 = vmul.f32 %v207, %v231
    %v245 = vmul.f32 %v208, %v228
    %v246 = vmul.f32 %v209, %v229
    %v247 = vmul.f32 %v210, %v230
    %v248 = vmul.f32 %v211, %v231
    %v249 = vmul.f32 %v212, %v228
    %v250 = vmul.f32 %v213, %v229
    %v251 = vmul.f32 %v214, %v230
    %v252 = vmul.f32 %v215, %v231
    %v253 = vmul.f32 %v216, %v228
    %v254 = vmul.f32 %v217, %v229
    %v255 = vmul.f32 %v218, %v230
    %v256 = vmul.f32 %v219, %v231
    %v257 = vmul.f32 %v220, %v228
    %v258 = vmul.f32 %v221, %v229
    %v259 = vmul.f32 %v222, %v230
    %v260 = vmul.f32 %v223, %v231
    %v261 = vmul.f32 %v224, %v228
    %v262 = vmul.f32 %v225, %v229
    %v263 = vmul.f32 %v226, %v230
    %v264 = vmul.f32 %v227, %v231
    %297 = vset.pattern.permute.xlu0 0
    %298 = vperm.xlu0 %297, %v233
    %v299 = vpop.permute.xlu0 %298
    %300 = vset.pattern.permute.xlu0 0
    %301 = vperm.xlu0 %300, %v234
    %v302 = vpop.permute.xlu0 %301
    %303 = vset.pattern.permute.xlu0 0
    %304 = vperm.xlu0 %303, %v235
    %v305 = vpop.permute.xlu0 %304
    %306 = vset.pattern.permute.xlu0 0
    %307 = vperm.xlu0 %306, %v236
    %v308 = vpop.permute.xlu0 %307
    %309 = vset.pattern.permute.xlu0 0
    %310 = vperm.xlu0 %309, %v237
    %v311 = vpop.permute.xlu0 %310
    %312 = vset.pattern.permute.xlu0 0
    %313 = vperm.xlu0 %312, %v238
    %v314 = vpop.permute.xlu0 %313
    %315 = vset.pattern.permute.xlu0 0
    %316 = vperm.xlu0 %315, %v239
    %v317 = vpop.permute.xlu0 %316
    %318 = vset.pattern.permute.xlu0 0
    %319 = vperm.xlu0 %318, %v240
    %v320 = vpop.permute.xlu0 %319
    %321 = vset.pattern.permute.xlu0 0
    %322 = vperm.xlu0 %321, %v241
    %v323 = vpop.permute.xlu0 %322
    %324 = vset.pattern.permute.xlu0 0
    %325 = vperm.xlu0 %324, %v242
    %v326 = vpop.permute.xlu0 %325
    %327 = vset.pattern.permute.xlu0 0
    %328 = vperm.xlu0 %327, %v243
    %v329 = vpop.permute.xlu0 %328
    %330 = vset.pattern.permute.xlu0 0
    %331 = vperm.xlu0 %330, %v244
    %v332 = vpop.permute.xlu0 %331
    %333 = vset.pattern.permute.xlu0 0
    %334 = vperm.xlu0 %333, %v245
    %v335 = vpop.permute.xlu0 %334
    %336 = vset.pattern.permute.xlu0 0
    %337 = vperm.xlu0 %336, %v246
    %v338 = vpop.permute.xlu0 %337
    %339 = vset.pattern.permute.xlu0 0
    %340 = vperm.xlu0 %339, %v247
    %v341 = vpop.permute.xlu0 %340
    %342 = vset.pattern.permute.xlu0 0
    %343 = vperm.xlu0 %342, %v248
    %v344 = vpop.permute.xlu0 %343
    %345 = vset.pattern.permute.xlu0 0
    %346 = vperm.xlu0 %345, %v249
    %v347 = vpop.permute.xlu0 %346
    %348 = vset.pattern.permute.xlu0 0
    %349 = vperm.xlu0 %348, %v250
    %v350 = vpop.permute.xlu0 %349
    %351 = vset.pattern.permute.xlu0 0
    %352 = vperm.xlu0 %351, %v251
    %v353 = vpop.permute.xlu0 %352
    %354 = vset.pattern.permute.xlu0 0
    %355 = vperm.xlu0 %354, %v252
    %v356 = vpop.permute.xlu0 %355
    %357 = vset.pattern.permute.xlu0 0
    %358 = vperm.xlu0 %357, %v253
    %v359 = vpop.permute.xlu0 %358
    %360 = vset.pattern.permute.xlu0 0
    %361 = vperm.xlu0 %360, %v254
    %v362 = vpop.permute.xlu0 %361
    %363 = vset.pattern.permute.xlu0 0
    %364 = vperm.xlu0 %363, %v255
    %v365 = vpop.permute.xlu0 %364
    %366 = vset.pattern.permute.xlu0 0
    %367 = vperm.xlu0 %366, %v256
    %v368 = vpop.permute.xlu0 %367
    %369 = vset.pattern.permute.xlu0 0
    %370 = vperm.xlu0 %369, %v257
    %v371 = vpop.permute.xlu0 %370
    %372 = vset.pattern.permute.xlu0 0
    %373 = vperm.xlu0 %372, %v258
    %v374 = vpop.permute.xlu0 %373
    %375 = vset.pattern.permute.xlu0 0
    %376 = vperm.xlu0 %375, %v259
    %v377 = vpop.permute.xlu0 %376
    %378 = vset.pattern.permute.xlu0 0
    %379 = vperm.xlu0 %378, %v260
    %v380 = vpop.permute.xlu0 %379
    %381 = vset.pattern.permute.xlu0 0
    %382 = vperm.xlu0 %381, %v261
    %v383 = vpop.permute.xlu0 %382
    %384 = vset.pattern.permute.xlu0 0
    %385 = vperm.xlu0 %384, %v262
    %v386 = vpop.permute.xlu0 %385
    %387 = vset.pattern.permute.xlu0 0
    %388 = vperm.xlu0 %387, %v263
    %v389 = vpop.permute.xlu0 %388
    %390 = vset.pattern.permute.xlu0 0
    %391 = vperm.xlu0 %390, %v264
    %v392 = vpop.permute.xlu0 %391
    %v393 = vlaneseq
    %v394 = vand.u32 %v393, 127
    %v395 = vlaneseq
    %v396 = vshrl.u32 %v395, 7
    %v397 = vsub.s32 %v394, %v396
    %v398 = vrot.slane %v299, %v397
    %v399 = vadd.s32 %v394, 4294967288
    %v400 = vlaneseq
    %v401 = vshrl.u32 %v400, 7
    %v402 = vsub.s32 %v399, %v401
    %v403 = vrot.slane %v302, %v402
    %vm404 = vcmask 130112
    %v405 = vsel %vm404, %v403, %v398
    %v406 = vadd.s32 %v394, 4294967280
    %v407 = vlaneseq
    %v408 = vshrl.u32 %v407, 7
    %v409 = vsub.s32 %v406, %v408
    %v410 = vrot.slane %v305, %v409
    %vm411 = vcmask 195712
    %v412 = vsel %vm411, %v410, %v405
    %v413 = vadd.s32 %v394, 4294967272
    %v414 = vlaneseq
    %v415 = vshrl.u32 %v414, 7
    %v416 = vsub.s32 %v413, %v415
    %v417 = vrot.slane %v308, %v416
    %vm418 = vcmask 261312
    %v419 = vsel %vm418, %v417, %v412
    %v420 = vlaneseq
    %v421 = vshrl.u32 %v420, 7
    %v422 = vsub.s32 %v394, %v421
    %v423 = vrot.slane %v311, %v422
    %v424 = vlaneseq
    %v425 = vshrl.u32 %v424, 7
    %v426 = vsub.s32 %v399, %v425
    %v427 = vrot.slane %v314, %v426
    %v428 = vsel %vm404, %v427, %v423
    %v429 = vlaneseq
    %v430 = vshrl.u32 %v429, 7
    %v431 = vsub.s32 %v406, %v430
    %v432 = vrot.slane %v317, %v431
    %v433 = vsel %vm411, %v432, %v428
    %v434 = vlaneseq
    %v435 = vshrl.u32 %v434, 7
    %v436 = vsub.s32 %v413, %v435
    %v437 = vrot.slane %v320, %v436
    %v438 = vsel %vm418, %v437, %v433
    %v439 = vlaneseq
    %v440 = vshrl.u32 %v439, 7
    %v441 = vsub.s32 %v394, %v440
    %v442 = vrot.slane %v323, %v441
    %v443 = vlaneseq
    %v444 = vshrl.u32 %v443, 7
    %v445 = vsub.s32 %v399, %v444
    %v446 = vrot.slane %v326, %v445
    %v447 = vsel %vm404, %v446, %v442
    %v448 = vlaneseq
    %v449 = vshrl.u32 %v448, 7
    %v450 = vsub.s32 %v406, %v449
    %v451 = vrot.slane %v329, %v450
    %v452 = vsel %vm411, %v451, %v447
    %v453 = vlaneseq
    %v454 = vshrl.u32 %v453, 7
    %v455 = vsub.s32 %v413, %v454
    %v456 = vrot.slane %v332, %v455
    %v457 = vsel %vm418, %v456, %v452
    %v458 = vlaneseq
    %v459 = vshrl.u32 %v458, 7
    %v460 = vsub.s32 %v394, %v459
    %v461 = vrot.slane %v335, %v460
    %v462 = vlaneseq
    %v463 = vshrl.u32 %v462, 7
    %v464 = vsub.s32 %v399, %v463
    %v465 = vrot.slane %v338, %v464
    %v466 = vsel %vm404, %v465, %v461
    %v467 = vlaneseq
    %v468 = vshrl.u32 %v467, 7
    %v469 = vsub.s32 %v406, %v468
    %v470 = vrot.slane %v341, %v469
    %v471 = vsel %vm411, %v470, %v466
    %v472 = vlaneseq
    %v473 = vshrl.u32 %v472, 7
    %v474 = vsub.s32 %v413, %v473
    %v475 = vrot.slane %v344, %v474
    %v476 = vsel %vm418, %v475, %v471
    %v477 = vlaneseq
    %v478 = vshrl.u32 %v477, 7
    %v479 = vsub.s32 %v394, %v478
    %v480 = vrot.slane %v347, %v479
    %v481 = vlaneseq
    %v482 = vshrl.u32 %v481, 7
    %v483 = vsub.s32 %v399, %v482
    %v484 = vrot.slane %v350, %v483
    %v485 = vsel %vm404, %v484, %v480
    %v486 = vlaneseq
    %v487 = vshrl.u32 %v486, 7
    %v488 = vsub.s32 %v406, %v487
    %v489 = vrot.slane %v353, %v488
    %v490 = vsel %vm411, %v489, %v485
    %v491 = vlaneseq
    %v492 = vshrl.u32 %v491, 7
    %v493 = vsub.s32 %v413, %v492
    %v494 = vrot.slane %v356, %v493
    %v495 = vsel %vm418, %v494, %v490
    %v496 = vlaneseq
    %v497 = vshrl.u32 %v496, 7
    %v498 = vsub.s32 %v394, %v497
    %v499 = vrot.slane %v359, %v498
    %v500 = vlaneseq
    %v501 = vshrl.u32 %v500, 7
    %v502 = vsub.s32 %v399, %v501
    %v503 = vrot.slane %v362, %v502
    %v504 = vsel %vm404, %v503, %v499
    %v505 = vlaneseq
    %v506 = vshrl.u32 %v505, 7
    %v507 = vsub.s32 %v406, %v506
    %v508 = vrot.slane %v365, %v507
    %v509 = vsel %vm411, %v508, %v504
    %v510 = vlaneseq
    %v511 = vshrl.u32 %v510, 7
    %v512 = vsub.s32 %v413, %v511
    %v513 = vrot.slane %v368, %v512
    %v514 = vsel %vm418, %v513, %v509
    %v515 = vlaneseq
    %v516 = vshrl.u32 %v515, 7
    %v517 = vsub.s32 %v394, %v516
    %v518 = vrot.slane %v371, %v517
    %v519 = vlaneseq
    %v520 = vshrl.u32 %v519, 7
    %v521 = vsub.s32 %v399, %v520
    %v522 = vrot.slane %v374, %v521
    %v523 = vsel %vm404, %v522, %v518
    %v524 = vlaneseq
    %v525 = vshrl.u32 %v524, 7
    %v526 = vsub.s32 %v406, %v525
    %v527 = vrot.slane %v377, %v526
    %v528 = vsel %vm411, %v527, %v523
    %v529 = vlaneseq
    %v530 = vshrl.u32 %v529, 7
    %v531 = vsub.s32 %v413, %v530
    %v532 = vrot.slane %v380, %v531
    %v533 = vsel %vm418, %v532, %v528
    %v534 = vlaneseq
    %v535 = vshrl.u32 %v534, 7
    %v536 = vsub.s32 %v394, %v535
    %v537 = vrot.slane %v383, %v536
    %v538 = vlaneseq
    %v539 = vshrl.u32 %v538, 7
    %v540 = vsub.s32 %v399, %v539
    %v541 = vrot.slane %v386, %v540
    %v542 = vsel %vm404, %v541, %v537
    %v543 = vlaneseq
    %v544 = vshrl.u32 %v543, 7
    %v545 = vsub.s32 %v406, %v544
    %v546 = vrot.slane %v389, %v545
    %v547 = vsel %vm411, %v546, %v542
    %v548 = vlaneseq
    %v549 = vshrl.u32 %v548, 7
    %v550 = vsub.s32 %v413, %v549
    %v551 = vrot.slane %v392, %v550
    %v552 = vsel %vm418, %v551, %v547
    %vm553 = vcmask 1041409
    %v554 = vsel %vm553, %v438, %v419
    %vm555 = vcmask 1042434
    %v556 = vsel %vm555, %v457, %v554
    %vm557 = vcmask 1043459
    %v558 = vsel %vm557, %v476, %v556
    %vm559 = vcmask 1044484
    %v560 = vsel %vm559, %v495, %v558
    %vm561 = vcmask 1045509
    %v562 = vsel %vm561, %v514, %v560
    %vm563 = vcmask 1046534
    %v564 = vsel %vm563, %v533, %v562
    %vm565 = vcmask 1047559
    %v566 = vsel %vm565, %v552, %v564
    %vm568 = vcmask 261120
    %v569 = vsel %vm568, %v566, 0.0
    %570 = vadd.xlane.f32.xlu0 %v569
    %v571 = vpop.xlane.xlu0 %570
    %572 = vset.pattern.permute.xlu0 1
    %573 = vperm.xlu0 %572, %v233
    %v574 = vpop.permute.xlu0 %573
    %575 = vset.pattern.permute.xlu0 1
    %576 = vperm.xlu0 %575, %v234
    %v577 = vpop.permute.xlu0 %576
    %578 = vset.pattern.permute.xlu0 1
    %579 = vperm.xlu0 %578, %v235
    %v580 = vpop.permute.xlu0 %579
    %581 = vset.pattern.permute.xlu0 1
    %582 = vperm.xlu0 %581, %v236
    %v583 = vpop.permute.xlu0 %582
    %584 = vset.pattern.permute.xlu0 1
    %585 = vperm.xlu0 %584, %v237
    %v586 = vpop.permute.xlu0 %585
    %587 = vset.pattern.permute.xlu0 1
    %588 = vperm.xlu0 %587, %v238
    %v589 = vpop.permute.xlu0 %588
    %590 = vset.pattern.permute.xlu0 1
    %591 = vperm.xlu0 %590, %v239
    %v592 = vpop.permute.xlu0 %591
    %593 = vset.pattern.permute.xlu0 1
    %594 = vperm.xlu0 %593, %v240
    %v595 = vpop.permute.xlu0 %594
    %596 = vset.pattern.permute.xlu0 1
    %597 = vperm.xlu0 %596, %v241
    %v598 = vpop.permute.xlu0 %597
    %599 = vset.pattern.permute.xlu0 1
    %600 = vperm.xlu0 %599, %v242
    %v601 = vpop.permute.xlu0 %600
    %602 = vset.pattern.permute.xlu0 1
    %603 = vperm.xlu0 %602, %v243
    %v604 = vpop.permute.xlu0 %603
    %605 = vset.pattern.permute.xlu0 1
    %606 = vperm.xlu0 %605, %v244
    %v607 = vpop.permute.xlu0 %606
    %608 = vset.pattern.permute.xlu0 1
    %609 = vperm.xlu0 %608, %v245
    %v610 = vpop.permute.xlu0 %609
    %611 = vset.pattern.permute.xlu0 1
    %612 = vperm.xlu0 %611, %v246
    %v613 = vpop.permute.xlu0 %612
    %614 = vset.pattern.permute.xlu0 1
    %615 = vperm.xlu0 %614, %v247
    %v616 = vpop.permute.xlu0 %615
    %617 = vset.pattern.permute.xlu0 1
    %618 = vperm.xlu0 %617, %v248
    %v619 = vpop.permute.xlu0 %618
    %620 = vset.pattern.permute.xlu0 1
    %621 = vperm.xlu0 %620, %v249
    %v622 = vpop.permute.xlu0 %621
    %623 = vset.pattern.permute.xlu0 1
    %624 = vperm.xlu0 %623, %v250
    %v625 = vpop.permute.xlu0 %624
    %626 = vset.pattern.permute.xlu0 1
    %627 = vperm.xlu0 %626, %v251
    %v628 = vpop.permute.xlu0 %627
    %629 = vset.pattern.permute.xlu0 1
    %630 = vperm.xlu0 %629, %v252
    %v631 = vpop.permute.xlu0 %630
    %632 = vset.pattern.permute.xlu0 1
    %633 = vperm.xlu0 %632, %v253
    %v634 = vpop.permute.xlu0 %633
    %635 = vset.pattern.permute.xlu0 1
    %636 = vperm.xlu0 %635, %v254
    %v637 = vpop.permute.xlu0 %636
    %638 = vset.pattern.permute.xlu0 1
    %639 = vperm.xlu0 %638, %v255
    %v640 = vpop.permute.xlu0 %639
    %641 = vset.pattern.permute.xlu0 1
    %642 = vperm.xlu0 %641, %v256
    %v643 = vpop.permute.xlu0 %642
    %644 = vset.pattern.permute.xlu0 1
    %645 = vperm.xlu0 %644, %v257
    %v646 = vpop.permute.xlu0 %645
    %647 = vset.pattern.permute.xlu0 1
    %648 = vperm.xlu0 %647, %v258
    %v649 = vpop.permute.xlu0 %648
    %650 = vset.pattern.permute.xlu0 1
    %651 = vperm.xlu0 %650, %v259
    %v652 = vpop.permute.xlu0 %651
    %653 = vset.pattern.permute.xlu0 1
    %654 = vperm.xlu0 %653, %v260
    %v655 = vpop.permute.xlu0 %654
    %656 = vset.pattern.permute.xlu0 1
    %657 = vperm.xlu0 %656, %v261
    %v658 = vpop.permute.xlu0 %657
    %659 = vset.pattern.permute.xlu0 1
    %660 = vperm.xlu0 %659, %v262
    %v661 = vpop.permute.xlu0 %660
    %662 = vset.pattern.permute.xlu0 1
    %663 = vperm.xlu0 %662, %v263
    %v664 = vpop.permute.xlu0 %663
    %665 = vset.pattern.permute.xlu0 1
    %666 = vperm.xlu0 %665, %v264
    %v667 = vpop.permute.xlu0 %666
    %v668 = vlaneseq
    %v669 = vshrl.u32 %v668, 7
    %v670 = vsub.s32 %v394, %v669
    %v671 = vrot.slane %v574, %v670
    %v672 = vlaneseq
    %v673 = vshrl.u32 %v672, 7
    %v674 = vsub.s32 %v399, %v673
    %v675 = vrot.slane %v577, %v674
    %v676 = vsel %vm404, %v675, %v671
    %v677 = vlaneseq
    %v678 = vshrl.u32 %v677, 7
    %v679 = vsub.s32 %v406, %v678
    %v680 = vrot.slane %v580, %v679
    %v681 = vsel %vm411, %v680, %v676
    %v682 = vlaneseq
    %v683 = vshrl.u32 %v682, 7
    %v684 = vsub.s32 %v413, %v683
    %v685 = vrot.slane %v583, %v684
    %v686 = vsel %vm418, %v685, %v681
    %v687 = vlaneseq
    %v688 = vshrl.u32 %v687, 7
    %v689 = vsub.s32 %v394, %v688
    %v690 = vrot.slane %v586, %v689
    %v691 = vlaneseq
    %v692 = vshrl.u32 %v691, 7
    %v693 = vsub.s32 %v399, %v692
    %v694 = vrot.slane %v589, %v693
    %v695 = vsel %vm404, %v694, %v690
    %v696 = vlaneseq
    %v697 = vshrl.u32 %v696, 7
    %v698 = vsub.s32 %v406, %v697
    %v699 = vrot.slane %v592, %v698
    %v700 = vsel %vm411, %v699, %v695
    %v701 = vlaneseq
    %v702 = vshrl.u32 %v701, 7
    %v703 = vsub.s32 %v413, %v702
    %v704 = vrot.slane %v595, %v703
    %v705 = vsel %vm418, %v704, %v700
    %v706 = vlaneseq
    %v707 = vshrl.u32 %v706, 7
    %v708 = vsub.s32 %v394, %v707
    %v709 = vrot.slane %v598, %v708
    %v710 = vlaneseq
    %v711 = vshrl.u32 %v710, 7
    %v712 = vsub.s32 %v399, %v711
    %v713 = vrot.slane %v601, %v712
    %v714 = vsel %vm404, %v713, %v709
    %v715 = vlaneseq
    %v716 = vshrl.u32 %v715, 7
    %v717 = vsub.s32 %v406, %v716
    %v718 = vrot.slane %v604, %v717
    %v719 = vsel %vm411, %v718, %v714
    %v720 = vlaneseq
    %v721 = vshrl.u32 %v720, 7
    %v722 = vsub.s32 %v413, %v721
    %v723 = vrot.slane %v607, %v722
    %v724 = vsel %vm418, %v723, %v719
    %v725 = vlaneseq
    %v726 = vshrl.u32 %v725, 7
    %v727 = vsub.s32 %v394, %v726
    %v728 = vrot.slane %v610, %v727
    %v729 = vlaneseq
    %v730 = vshrl.u32 %v729, 7
    %v731 = vsub.s32 %v399, %v730
    %v732 = vrot.slane %v613, %v731
    %v733 = vsel %vm404, %v732, %v728
    %v734 = vlaneseq
    %v735 = vshrl.u32 %v734, 7
    %v736 = vsub.s32 %v406, %v735
    %v737 = vrot.slane %v616, %v736
    %v738 = vsel %vm411, %v737, %v733
    %v739 = vlaneseq
    %v740 = vshrl.u32 %v739, 7
    %v741 = vsub.s32 %v413, %v740
    %v742 = vrot.slane %v619, %v741
    %v743 = vsel %vm418, %v742, %v738
    %v744 = vlaneseq
    %v745 = vshrl.u32 %v744, 7
    %v746 = vsub.s32 %v394, %v745
    %v747 = vrot.slane %v622, %v746
    %v748 = vlaneseq
    %v749 = vshrl.u32 %v748, 7
    %v750 = vsub.s32 %v399, %v749
    %v751 = vrot.slane %v625, %v750
    %v752 = vsel %vm404, %v751, %v747
    %v753 = vlaneseq
    %v754 = vshrl.u32 %v753, 7
    %v755 = vsub.s32 %v406, %v754
    %v756 = vrot.slane %v628, %v755
    %v757 = vsel %vm411, %v756, %v752
    %v758 = vlaneseq
    %v759 = vshrl.u32 %v758, 7
    %v760 = vsub.s32 %v413, %v759
    %v761 = vrot.slane %v631, %v760
    %v762 = vsel %vm418, %v761, %v757
    %v763 = vlaneseq
    %v764 = vshrl.u32 %v763, 7
    %v765 = vsub.s32 %v394, %v764
    %v766 = vrot.slane %v634, %v765
    %v767 = vlaneseq
    %v768 = vshrl.u32 %v767, 7
    %v769 = vsub.s32 %v399, %v768
    %v770 = vrot.slane %v637, %v769
    %v771 = vsel %vm404, %v770, %v766
    %v772 = vlaneseq
    %v773 = vshrl.u32 %v772, 7
    %v774 = vsub.s32 %v406, %v773
    %v775 = vrot.slane %v640, %v774
    %v776 = vsel %vm411, %v775, %v771
    %v777 = vlaneseq
    %v778 = vshrl.u32 %v777, 7
    %v779 = vsub.s32 %v413, %v778
    %v780 = vrot.slane %v643, %v779
    %v781 = vsel %vm418, %v780, %v776
    %v782 = vlaneseq
    %v783 = vshrl.u32 %v782, 7
    %v784 = vsub.s32 %v394, %v783
    %v785 = vrot.slane %v646, %v784
    %v786 = vlaneseq
    %v787 = vshrl.u32 %v786, 7
    %v788 = vsub.s32 %v399, %v787
    %v789 = vrot.slane %v649, %v788
    %v790 = vsel %vm404, %v789, %v785
    %v791 = vlaneseq
    %v792 = vshrl.u32 %v791, 7
    %v793 = vsub.s32 %v406, %v792
    %v794 = vrot.slane %v652, %v793
    %v795 = vsel %vm411, %v794, %v790
    %v796 = vlaneseq
    %v797 = vshrl.u32 %v796, 7
    %v798 = vsub.s32 %v413, %v797
    %v799 = vrot.slane %v655, %v798
    %v800 = vsel %vm418, %v799, %v795
    %v801 = vlaneseq
    %v802 = vshrl.u32 %v801, 7
    %v803 = vsub.s32 %v394, %v802
    %v804 = vrot.slane %v658, %v803
    %v805 = vlaneseq
    %v806 = vshrl.u32 %v805, 7
    %v807 = vsub.s32 %v399, %v806
    %v808 = vrot.slane %v661, %v807
    %v809 = vsel %vm404, %v808, %v804
    %v810 = vlaneseq
    %v811 = vshrl.u32 %v810, 7
    %v812 = vsub.s32 %v406, %v811
    %v813 = vrot.slane %v664, %v812
    %v814 = vsel %vm411, %v813, %v809
    %v815 = vlaneseq
    %v816 = vshrl.u32 %v815, 7
    %v817 = vsub.s32 %v413, %v816
    %v818 = vrot.slane %v667, %v817
    %v819 = vsel %vm418, %v818, %v814
    %v820 = vsel %vm553, %v705, %v686
    %v821 = vsel %vm555, %v724, %v820
    %v822 = vsel %vm557, %v743, %v821
    %v823 = vsel %vm559, %v762, %v822
    %v824 = vsel %vm561, %v781, %v823
    %v825 = vsel %vm563, %v800, %v824
    %v826 = vsel %vm565, %v819, %v825
    %v828 = vsel %vm568, %v826, 0.0
    %829 = vadd.xlane.f32.xlu0 %v828
    %v830 = vpop.xlane.xlu0 %829
    %vm831 = vcmask 7168
    %v832 = vsel %vm831, %v571, %v830
    %v833 = vmax.f32 %v832, 0.0
    %835 = vset.pattern.permute.xlu0 0
    %836 = vperm.xlu0 %835, %v833
    %v837 = vpop.permute.xlu0 %836
    %v839 = vlaneseq
    %v840 = vshrl.u32 %v839, 7
    %v841 = vsub.s32 0, %v840
    %v842 = vrot.slane %v232, %v841
    %v843 = vmul.f32 %v837, %v842
    %844 = vset.pattern.permute.xlu0 1
    %845 = vperm.xlu0 %844, %v833
    %v846 = vpop.permute.xlu0 %845
    %v848 = vlaneseq
    %v849 = vshrl.u32 %v848, 7
    %v850 = vsub.s32 1, %v849
    %v851 = vrot.slane %v232, %v850
    %v852 = vmul.f32 %v846, %v851
    %v853 = vadd.f32 %v843, %v852
    %v854 = vxor.u32 %v853, 2147483648
    %v855 = vmul.f32 %v854, 1.442695
    %v856 = vpow.pop %v855
    %v857 = vadd.f32 %v856, 1.0
    %v858 = vrcp.pop %v857
    %v859 = vmul.f32 1.0, %v858
    %v860 = vld [vmem:[%s3] sm:$0x1]
    %v862 = vlaneseq
    %v863 = vshrl.u32 %v862, 7
    %v864 = vsub.s32 0, %v863
    %v865 = vrot.slane %v860, %v864
    %v867 = vmul.f32 %v859, %v865
    %v868 = vld [vmem:[%s4] sm:$0x3]
    %v869 = vlaneseq
    %v870 = vshrl.u32 %v869, 7
    %v871 = vsub.s32 0, %v870
    %v872 = vrot.slane %v867, %v871
    %874 = vbcast.lane.b32.xlu0 %v872, 256
    %v875 = vpop.permute.xlu0 %874
    %s877 = sor.u32 256, 8
    %878 = vbcast.lane.b32.xlu0 %v872, %s877
    %v879 = vpop.permute.xlu0 %878
    %s881 = sor.u32 256, 16
    %882 = vbcast.lane.b32.xlu0 %v872, %s881
    %v883 = vpop.permute.xlu0 %882
    %s885 = sor.u32 256, 24
    %886 = vbcast.lane.b32.xlu0 %v872, %s885
    %v887 = vpop.permute.xlu0 %886
    %v888 = vlaneseq
    %v889 = vshrl.u32 %v888, 7
    %v890 = vsub.s32 1, %v889
    %v891 = vrot.slane %v867, %v890
    %893 = vbcast.lane.b32.xlu0 %v891, 256
    %v894 = vpop.permute.xlu0 %893
    %s896 = sor.u32 256, 8
    %897 = vbcast.lane.b32.xlu0 %v891, %s896
    %v898 = vpop.permute.xlu0 %897
    %s900 = sor.u32 256, 16
    %901 = vbcast.lane.b32.xlu0 %v891, %s900
    %v902 = vpop.permute.xlu0 %901
    %s904 = sor.u32 256, 24
    %905 = vbcast.lane.b32.xlu0 %v891, %s904
    %v906 = vpop.permute.xlu0 %905
    %v907 = vlaneseq
    %v908 = vshrl.u32 %v907, 7
    %v909 = vsub.s32 2, %v908
    %v910 = vrot.slane %v867, %v909
    %912 = vbcast.lane.b32.xlu0 %v910, 256
    %v913 = vpop.permute.xlu0 %912
    %s915 = sor.u32 256, 8
    %916 = vbcast.lane.b32.xlu0 %v910, %s915
    %v917 = vpop.permute.xlu0 %916
    %s919 = sor.u32 256, 16
    %920 = vbcast.lane.b32.xlu0 %v910, %s919
    %v921 = vpop.permute.xlu0 %920
    %s923 = sor.u32 256, 24
    %924 = vbcast.lane.b32.xlu0 %v910, %s923
    %v925 = vpop.permute.xlu0 %924
    %v926 = vlaneseq
    %v927 = vshrl.u32 %v926, 7
    %v928 = vsub.s32 3, %v927
    %v929 = vrot.slane %v867, %v928
    %931 = vbcast.lane.b32.xlu0 %v929, 256
    %v932 = vpop.permute.xlu0 %931
    %s934 = sor.u32 256, 8
    %935 = vbcast.lane.b32.xlu0 %v929, %s934
    %v936 = vpop.permute.xlu0 %935
    %s938 = sor.u32 256, 16
    %939 = vbcast.lane.b32.xlu0 %v929, %s938
    %v940 = vpop.permute.xlu0 %939
    %s942 = sor.u32 256, 24
    %943 = vbcast.lane.b32.xlu0 %v929, %s942
    %v944 = vpop.permute.xlu0 %943
    %v945 = vlaneseq
    %v946 = vshrl.u32 %v945, 7
    %v947 = vsub.s32 4, %v946
    %v948 = vrot.slane %v867, %v947
    %950 = vbcast.lane.b32.xlu0 %v948, 256
    %v951 = vpop.permute.xlu0 %950
    %s953 = sor.u32 256, 8
    %954 = vbcast.lane.b32.xlu0 %v948, %s953
    %v955 = vpop.permute.xlu0 %954
    %s957 = sor.u32 256, 16
    %958 = vbcast.lane.b32.xlu0 %v948, %s957
    %v959 = vpop.permute.xlu0 %958
    %s961 = sor.u32 256, 24
    %962 = vbcast.lane.b32.xlu0 %v948, %s961
    %v963 = vpop.permute.xlu0 %962
    %v964 = vlaneseq
    %v965 = vshrl.u32 %v964, 7
    %v966 = vsub.s32 5, %v965
    %v967 = vrot.slane %v867, %v966
    %969 = vbcast.lane.b32.xlu0 %v967, 256
    %v970 = vpop.permute.xlu0 %969
    %s972 = sor.u32 256, 8
    %973 = vbcast.lane.b32.xlu0 %v967, %s972
    %v974 = vpop.permute.xlu0 %973
    %s976 = sor.u32 256, 16
    %977 = vbcast.lane.b32.xlu0 %v967, %s976
    %v978 = vpop.permute.xlu0 %977
    %s980 = sor.u32 256, 24
    %981 = vbcast.lane.b32.xlu0 %v967, %s980
    %v982 = vpop.permute.xlu0 %981
    %v983 = vlaneseq
    %v984 = vshrl.u32 %v983, 7
    %v985 = vsub.s32 6, %v984
    %v986 = vrot.slane %v867, %v985
    %988 = vbcast.lane.b32.xlu0 %v986, 256
    %v989 = vpop.permute.xlu0 %988
    %s991 = sor.u32 256, 8
    %992 = vbcast.lane.b32.xlu0 %v986, %s991
    %v993 = vpop.permute.xlu0 %992
    %s995 = sor.u32 256, 16
    %996 = vbcast.lane.b32.xlu0 %v986, %s995
    %v997 = vpop.permute.xlu0 %996
    %s999 = sor.u32 256, 24
    %1000 = vbcast.lane.b32.xlu0 %v986, %s999
    %v1001 = vpop.permute.xlu0 %1000
    %v1002 = vlaneseq
    %v1003 = vshrl.u32 %v1002, 7
    %v1004 = vsub.s32 7, %v1003
    %v1005 = vrot.slane %v867, %v1004
    %1007 = vbcast.lane.b32.xlu0 %v1005, 256
    %v1008 = vpop.permute.xlu0 %1007
    %s1010 = sor.u32 256, 8
    %1011 = vbcast.lane.b32.xlu0 %v1005, %s1010
    %v1012 = vpop.permute.xlu0 %1011
    %s1014 = sor.u32 256, 16
    %1015 = vbcast.lane.b32.xlu0 %v1005, %s1014
    %v1016 = vpop.permute.xlu0 %1015
    %s1018 = sor.u32 256, 24
    %1019 = vbcast.lane.b32.xlu0 %v1005, %s1018
    %v1020 = vpop.permute.xlu0 %1019
    %v1021 = vmul.f32 %v35, %v875
    %v1022 = vmul.f32 %v36, %v875
    %v1023 = vmul.f32 %v37, %v879
    %v1024 = vmul.f32 %v38, %v879
    %v1025 = vmul.f32 %v39, %v883
    %v1026 = vmul.f32 %v40, %v883
    %v1027 = vmul.f32 %v41, %v887
    %v1028 = vmul.f32 %v42, %v887
    %v1029 = vmul.f32 %v43, %v894
    %v1030 = vmul.f32 %v44, %v894
    %v1031 = vmul.f32 %v45, %v898
    %v1032 = vmul.f32 %v46, %v898
    %v1033 = vmul.f32 %v47, %v902
    %v1034 = vmul.f32 %v48, %v902
    %v1035 = vmul.f32 %v49, %v906
    %v1036 = vmul.f32 %v50, %v906
    %v1037 = vmul.f32 %v51, %v913
    %v1038 = vmul.f32 %v52, %v913
    %v1039 = vmul.f32 %v53, %v917
    %v1040 = vmul.f32 %v54, %v917
    %v1041 = vmul.f32 %v55, %v921
    %v1042 = vmul.f32 %v56, %v921
    %v1043 = vmul.f32 %v57, %v925
    %v1044 = vmul.f32 %v58, %v925
    %v1045 = vmul.f32 %v59, %v932
    %v1046 = vmul.f32 %v60, %v932
    %v1047 = vmul.f32 %v61, %v936
    %v1048 = vmul.f32 %v62, %v936
    %v1049 = vmul.f32 %v63, %v940
    %v1050 = vmul.f32 %v64, %v940
    %v1051 = vmul.f32 %v65, %v944
    %v1052 = vmul.f32 %v66, %v944
    %v1053 = vmul.f32 %v67, %v951
    %v1054 = vmul.f32 %v68, %v951
    %v1055 = vmul.f32 %v69, %v955
    %v1056 = vmul.f32 %v70, %v955
    %v1057 = vmul.f32 %v71, %v959
    %v1058 = vmul.f32 %v72, %v959
    %v1059 = vmul.f32 %v73, %v963
    %v1060 = vmul.f32 %v74, %v963
    %v1061 = vmul.f32 %v75, %v970
    %v1062 = vmul.f32 %v76, %v970
    %v1063 = vmul.f32 %v77, %v974
    %v1064 = vmul.f32 %v78, %v974
    %v1065 = vmul.f32 %v79, %v978
    %v1066 = vmul.f32 %v80, %v978
    %v1067 = vmul.f32 %v81, %v982
    %v1068 = vmul.f32 %v82, %v982
    %v1069 = vmul.f32 %v83, %v989
    %v1070 = vmul.f32 %v84, %v989
    %v1071 = vmul.f32 %v85, %v993
    %v1072 = vmul.f32 %v86, %v993
    %v1073 = vmul.f32 %v87, %v997
    %v1074 = vmul.f32 %v88, %v997
    %v1075 = vmul.f32 %v89, %v1001
    %v1076 = vmul.f32 %v90, %v1001
    %v1077 = vmul.f32 %v91, %v1008
    %v1078 = vmul.f32 %v92, %v1008
    %v1079 = vmul.f32 %v93, %v1012
    %v1080 = vmul.f32 %v94, %v1012
    %v1081 = vmul.f32 %v95, %v1016
    %v1082 = vmul.f32 %v96, %v1016
    %v1083 = vmul.f32 %v97, %v1020
    %v1084 = vmul.f32 %v98, %v1020
    %v1086 = vlaneseq
    %v1087 = vshrl.u32 %v1086, 7
    %v1088 = vsub.s32 0, %v1087
    %v1089 = vrot.slane %v868, %v1088
    %v1090 = vlaneseq
    %v1091 = vshrl.u32 %v1090, 7
    %v1092 = vsub.s32 1, %v1091
    %v1093 = vrot.slane %v868, %v1092
    %v1096 = vmul.f32 %v1021, %v1089
    %v1097 = vmul.f32 %v1022, %v1093
    %v1098 = vmul.f32 %v1023, %v1089
    %v1099 = vmul.f32 %v1024, %v1093
    %v1100 = vmul.f32 %v1025, %v1089
    %v1101 = vmul.f32 %v1026, %v1093
    %v1102 = vmul.f32 %v1027, %v1089
    %v1103 = vmul.f32 %v1028, %v1093
    %v1104 = vmul.f32 %v1029, %v1089
    %v1105 = vmul.f32 %v1030, %v1093
    %v1106 = vmul.f32 %v1031, %v1089
    %v1107 = vmul.f32 %v1032, %v1093
    %v1108 = vmul.f32 %v1033, %v1089
    %v1109 = vmul.f32 %v1034, %v1093
    %v1110 = vmul.f32 %v1035, %v1089
    %v1111 = vmul.f32 %v1036, %v1093
    %v1112 = vmul.f32 %v1037, %v1089
    %v1113 = vmul.f32 %v1038, %v1093
    %v1114 = vmul.f32 %v1039, %v1089
    %v1115 = vmul.f32 %v1040, %v1093
    %v1116 = vmul.f32 %v1041, %v1089
    %v1117 = vmul.f32 %v1042, %v1093
    %v1118 = vmul.f32 %v1043, %v1089
    %v1119 = vmul.f32 %v1044, %v1093
    %v1120 = vmul.f32 %v1045, %v1089
    %v1121 = vmul.f32 %v1046, %v1093
    %v1122 = vmul.f32 %v1047, %v1089
    %v1123 = vmul.f32 %v1048, %v1093
    %v1124 = vmul.f32 %v1049, %v1089
    %v1125 = vmul.f32 %v1050, %v1093
    %v1126 = vmul.f32 %v1051, %v1089
    %v1127 = vmul.f32 %v1052, %v1093
    %v1128 = vmul.f32 %v1053, %v1089
    %v1129 = vmul.f32 %v1054, %v1093
    %v1130 = vmul.f32 %v1055, %v1089
    %v1131 = vmul.f32 %v1056, %v1093
    %v1132 = vmul.f32 %v1057, %v1089
    %v1133 = vmul.f32 %v1058, %v1093
    %v1134 = vmul.f32 %v1059, %v1089
    %v1135 = vmul.f32 %v1060, %v1093
    %v1136 = vmul.f32 %v1061, %v1089
    %v1137 = vmul.f32 %v1062, %v1093
    %v1138 = vmul.f32 %v1063, %v1089
    %v1139 = vmul.f32 %v1064, %v1093
    %v1140 = vmul.f32 %v1065, %v1089
    %v1141 = vmul.f32 %v1066, %v1093
    %v1142 = vmul.f32 %v1067, %v1089
    %v1143 = vmul.f32 %v1068, %v1093
    %v1144 = vmul.f32 %v1069, %v1089
    %v1145 = vmul.f32 %v1070, %v1093
    %v1146 = vmul.f32 %v1071, %v1089
    %v1147 = vmul.f32 %v1072, %v1093
    %v1148 = vmul.f32 %v1073, %v1089
    %v1149 = vmul.f32 %v1074, %v1093
    %v1150 = vmul.f32 %v1075, %v1089
    %v1151 = vmul.f32 %v1076, %v1093
    %v1152 = vmul.f32 %v1077, %v1089
    %v1153 = vmul.f32 %v1078, %v1093
    %v1154 = vmul.f32 %v1079, %v1089
    %v1155 = vmul.f32 %v1080, %v1093
    %v1156 = vmul.f32 %v1081, %v1089
    %v1157 = vmul.f32 %v1082, %v1093
    %v1158 = vmul.f32 %v1083, %v1089
    %v1159 = vmul.f32 %v1084, %v1093
    %1160 = vst [vmem:[#allocation5] sm:$0xff] %v1096
    %1161 = vst [vmem:[#allocation5 + $0x8] sm:$0xff] %v1097
    %1162 = vst [vmem:[#allocation5 + $0x10] sm:$0xff] %v1098
    %1163 = vst [vmem:[#allocation5 + $0x18] sm:$0xff] %v1099
    %1164 = vst [vmem:[#allocation5 + $0x20] sm:$0xff] %v1100
    %1165 = vst [vmem:[#allocation5 + $0x28] sm:$0xff] %v1101
    %1166 = vst [vmem:[#allocation5 + $0x30] sm:$0xff] %v1102
    %1167 = vst [vmem:[#allocation5 + $0x38] sm:$0xff] %v1103
    %1168 = vst [vmem:[#allocation5 + $0x40] sm:$0xff] %v1104
    %1169 = vst [vmem:[#allocation5 + $0x48] sm:$0xff] %v1105
    %1170 = vst [vmem:[#allocation5 + $0x50] sm:$0xff] %v1106
    %1171 = vst [vmem:[#allocation5 + $0x58] sm:$0xff] %v1107
    %1172 = vst [vmem:[#allocation5 + $0x60] sm:$0xff] %v1108
    %1173 = vst [vmem:[#allocation5 + $0x68] sm:$0xff] %v1109
    %1174 = vst [vmem:[#allocation5 + $0x70] sm:$0xff] %v1110
    %1175 = vst [vmem:[#allocation5 + $0x78] sm:$0xff] %v1111
    %1176 = vst [vmem:[#allocation5 + $0x80] sm:$0xff] %v1112
    %1177 = vst [vmem:[#allocation5 + $0x88] sm:$0xff] %v1113
    %1178 = vst [vmem:[#allocation5 + $0x90] sm:$0xff] %v1114
    %1179 = vst [vmem:[#allocation5 + $0x98] sm:$0xff] %v1115
    %1180 = vst [vmem:[#allocation5 + $0xa0] sm:$0xff] %v1116
    %1181 = vst [vmem:[#allocation5 + $0xa8] sm:$0xff] %v1117
    %1182 = vst [vmem:[#allocation5 + $0xb0] sm:$0xff] %v1118
    %1183 = vst [vmem:[#allocation5 + $0xb8] sm:$0xff] %v1119
    %1184 = vst [vmem:[#allocation5 + $0xc0] sm:$0xff] %v1120
    %1185 = vst [vmem:[#allocation5 + $0xc8] sm:$0xff] %v1121
    %1186 = vst [vmem:[#allocation5 + $0xd0] sm:$0xff] %v1122
    %1187 = vst [vmem:[#allocation5 + $0xd8] sm:$0xff] %v1123
    %1188 = vst [vmem:[#allocation5 + $0xe0] sm:$0xff] %v1124
    %1189 = vst [vmem:[#allocation5 + $0xe8] sm:$0xff] %v1125
    %1190 = vst [vmem:[#allocation5 + $0xf0] sm:$0xff] %v1126
    %1191 = vst [vmem:[#allocation5 + $0xf8] sm:$0xff] %v1127
    %1192 = vst [vmem:[#allocation5 + $0x100] sm:$0xff] %v1128
    %1193 = vst [vmem:[#allocation5 + $0x108] sm:$0xff] %v1129
    %1194 = vst [vmem:[#allocation5 + $0x110] sm:$0xff] %v1130
    %1195 = vst [vmem:[#allocation5 + $0x118] sm:$0xff] %v1131
    %1196 = vst [vmem:[#allocation5 + $0x120] sm:$0xff] %v1132
    %1197 = vst [vmem:[#allocation5 + $0x128] sm:$0xff] %v1133
    %1198 = vst [vmem:[#allocation5 + $0x130] sm:$0xff] %v1134
    %1199 = vst [vmem:[#allocation5 + $0x138] sm:$0xff] %v1135
    %1200 = vst [vmem:[#allocation5 + $0x140] sm:$0xff] %v1136
    %1201 = vst [vmem:[#allocation5 + $0x148] sm:$0xff] %v1137
    %1202 = vst [vmem:[#allocation5 + $0x150] sm:$0xff] %v1138
    %1203 = vst [vmem:[#allocation5 + $0x158] sm:$0xff] %v1139
    %1204 = vst [vmem:[#allocation5 + $0x160] sm:$0xff] %v1140
    %1205 = vst [vmem:[#allocation5 + $0x168] sm:$0xff] %v1141
    %1206 = vst [vmem:[#allocation5 + $0x170] sm:$0xff] %v1142
    %1207 = vst [vmem:[#allocation5 + $0x178] sm:$0xff] %v1143
    %1208 = vst [vmem:[#allocation5 + $0x180] sm:$0xff] %v1144
    %1209 = vst [vmem:[#allocation5 + $0x188] sm:$0xff] %v1145
    %1210 = vst [vmem:[#allocation5 + $0x190] sm:$0xff] %v1146
    %1211 = vst [vmem:[#allocation5 + $0x198] sm:$0xff] %v1147
    %1212 = vst [vmem:[#allocation5 + $0x1a0] sm:$0xff] %v1148
    %1213 = vst [vmem:[#allocation5 + $0x1a8] sm:$0xff] %v1149
    %1214 = vst [vmem:[#allocation5 + $0x1b0] sm:$0xff] %v1150
    %1215 = vst [vmem:[#allocation5 + $0x1b8] sm:$0xff] %v1151
    %1216 = vst [vmem:[#allocation5 + $0x1c0] sm:$0xff] %v1152
    %1217 = vst [vmem:[#allocation5 + $0x1c8] sm:$0xff] %v1153
    %1218 = vst [vmem:[#allocation5 + $0x1d0] sm:$0xff] %v1154
    %1219 = vst [vmem:[#allocation5 + $0x1d8] sm:$0xff] %v1155
    %1220 = vst [vmem:[#allocation5 + $0x1e0] sm:$0xff] %v1156
    %1221 = vst [vmem:[#allocation5 + $0x1e8] sm:$0xff] %v1157
    %1222 = vst [vmem:[#allocation5 + $0x1f0] sm:$0xff] %v1158
    %1223 = vst [vmem:[#allocation5 + $0x1f8] sm:$0xff] %v1159
    // Predicated region
    $region26: #{tpu_custom_call.1} parent=1 // pred_check
      _
    $region27: #{tpu_custom_call.1} parent=1 // pred_check_branch
      %1225 = sbr.rel (0) target = $region29
    $region28: #{tpu_custom_call.1} parent=1 // pred_region
      %s1227 = ssub.s32 8192, 8192
      %1228 = vsyncadd [#allocation4], %s1227
      %s1229 = sshll.u32 [#allocation5], 4
      %s1230 = int_to_ptr.vmem [resolvable:$true] %s1229
      %1235 = dma.vmem_to_hbm [thread:$0]  %s1230, 8192, %s5, [#allocation4], 256, 256, 16
    $region29: #{tpu_custom_call.1} parent=1 // pred_fallthru
      _
    // Predicated region
    $region30: #{tpu_custom_call.1} parent=1 // pred_check
      _
    $region31: #{tpu_custom_call.1} parent=1 // pred_check_branch
      %1237 = sbr.rel (0) target = $region33
    $region32: #{tpu_custom_call.1} parent=1 // pred_region
      %1238 = dma.done [#allocation4], 8192
    $region33: #{tpu_custom_call.1} parent=1 // pred_fallthru
      _
    %1239 = vsyncpa [#allocation3], 1
    %1240 = vsyncpa [#allocation4], 1

// kernel: tpu_custom_call.1
$region0: #{tpu_custom_call.1}
  #allocation0 [shape = 'u32[]', space=smem, size = 0x4, offset = 0x4, fixed_abs, tag = 'smem constant byte address 0x4 - core index']
  #allocation1 [shape = 'u32[144,128]{1,0:T(1,128)}', space=vmem, size = 0x12000, scoped, tag = 'internal scratch']
  %s0 = inlined_call_operand.hbm [shape: f32[8,32,256], index: 0, kind: input, shape index: {}]
  %s1 = inlined_call_operand.vmem [shape: f32[32,2], index: 1, kind: input, shape index: {}]
  %s2 = inlined_call_operand.vmem [shape: f32[2,32], index: 2, kind: input, shape index: {}]
  %s3 = inlined_call_operand.vmem [shape: f32[1,32], index: 3, kind: input, shape index: {}]
  %s4 = inlined_call_operand.vmem [shape: f32[1,1,256], index: 4, kind: input, shape index: {}]
  %s5 = inlined_call_operand.hbm [shape: f32[8,32,256], index: 5, kind: output, shape index: {}]
  %s6 = sld [smem:[#allocation0]]
  $region34: #{tpu_custom_call.1} parent=0
    _
  %s8 = ssub.s32 1, %s6
  %s9 = scalar_select 0, %s8, %s6
  $region1: #{tpu_custom_call.1} parent=0
    #allocation2 [shape = 'u8[262144]{0}', space=vmem, size = 0x40000, scoped, tag = 'input window, operand 0, single buffered']
    #allocation3 [shape = 's32[1]{0}', space=sflag, size = 0x4, scoped, tag = 'scoped memory for tpu_custom_call.1']
    #allocation4 [shape = 's32[1]{0}', space=sflag, size = 0x4, scoped, tag = 'scoped memory for tpu_custom_call.1']
    #allocation5 [shape = 'u8[262144]{0}', space=vmem, size = 0x40000, scoped, tag = 'output window, operand 0, single buffered']
    %10 = vsyncpa [#allocation3], 0
    %11 = vsyncpa [#allocation4], 0
    // Predicated region
    $region2: #{tpu_custom_call.1} parent=1 // pred_check
      _
    $region3: #{tpu_custom_call.1} parent=1 // pred_check_branch
      %13 = sbr.rel (0) target = $region5
    $region4: #{tpu_custom_call.1} parent=1 // pred_region
      %s15 = ssub.s32 8192, 8192
      %16 = vsyncadd [#allocation3], %s15
      %s17 = sshll.u32 [#allocation2], 4
      %s18 = int_to_ptr.vmem [resolvable:$true] %s17
      %23 = dma.hbm_to_vmem [thread:$0]  %s0, 8192, %s18, [#allocation3], 256, 256, 16
    $region5: #{tpu_custom_call.1} parent=1 // pred_fallthru
      _
    // Predicated region
    $region6: #{tpu_custom_call.1} parent=1 // pred_check
      _
    $region7: #{tpu_custom_call.1} parent=1 // pred_check_branch
      %25 = sbr.rel (0) target = $region9
    $region8: #{tpu_custom_call.1} parent=1 // pred_region
      _
    $region9: #{tpu_custom_call.1} parent=1 // pred_fallthru
      _
    // Predicated region
    $region10: #{tpu_custom_call.1} parent=1 // pred_check
      _
    $region11: #{tpu_custom_call.1} parent=1 // pred_check_branch
      %27 = sbr.rel (0) target = $region13
    $region12: #{tpu_custom_call.1} parent=1 // pred_region
      _
    $region13: #{tpu_custom_call.1} parent=1 // pred_fallthru
      _
    // Predicated region
    $region14: #{tpu_custom_call.1} parent=1 // pred_check
      _
    $region15: #{tpu_custom_call.1} parent=1 // pred_check_branch
      %29 = sbr.rel (0) target = $region17
    $region16: #{tpu_custom_call.1} parent=1 // pred_region
      _
    $region17: #{tpu_custom_call.1} parent=1 // pred_fallthru
      _
    // Predicated region
    $region18: #{tpu_custom_call.1} parent=1 // pred_check
      _
    $region19: #{tpu_custom_call.1} parent=1 // pred_check_branch
      %31 = sbr.rel (0) target = $region21
    $region20: #{tpu_custom_call.1} parent=1 // pred_region
      _
    $region21: #{tpu_custom_call.1} parent=1 // pred_fallthru
      _
    // Predicated region
    $region22: #{tpu_custom_call.1} parent=1 // pred_check
      _
    $region23: #{tpu_custom_call.1} parent=1 // pred_check_branch
      %33 = sbr.rel (0) target = $region25
    $region24: #{tpu_custom_call.1} parent=1 // pred_region
      %34 = dma.done [#allocation3], 8192
    $region25: #{tpu_custom_call.1} parent=1 // pred_fallthru
      _
    %v35 = vld [vmem:[#allocation2] sm:$0xff]
    %v36 = vld [vmem:[#allocation2 + $0x8] sm:$0xff]
    %v37 = vld [vmem:[#allocation2 + $0x10] sm:$0xff]
    %v38 = vld [vmem:[#allocation2 + $0x18] sm:$0xff]
    %v39 = vld [vmem:[#allocation2 + $0x20] sm:$0xff]
    %v40 = vld [vmem:[#allocation2 + $0x28] sm:$0xff]
    %v41 = vld [vmem:[#allocation2 + $0x30] sm:$0xff]
    %v42 = vld [vmem:[#allocation2 + $0x38] sm:$0xff]
    %v43 = vld [vmem:[#allocation2 + $0x40] sm:$0xff]
    %v44 = vld [vmem:[#allocation2 + $0x48] sm:$0xff]
    %v45 = vld [vmem:[#allocation2 + $0x50] sm:$0xff]
    %v46 = vld [vmem:[#allocation2 + $0x58] sm:$0xff]
    %v47 = vld [vmem:[#allocation2 + $0x60] sm:$0xff]
    %v48 = vld [vmem:[#allocation2 + $0x68] sm:$0xff]
    %v49 = vld [vmem:[#allocation2 + $0x70] sm:$0xff]
    %v50 = vld [vmem:[#allocation2 + $0x78] sm:$0xff]
    %v51 = vld [vmem:[#allocation2 + $0x80] sm:$0xff]
    %v52 = vld [vmem:[#allocation2 + $0x88] sm:$0xff]
    %v53 = vld [vmem:[#allocation2 + $0x90] sm:$0xff]
    %v54 = vld [vmem:[#allocation2 + $0x98] sm:$0xff]
    %v55 = vld [vmem:[#allocation2 + $0xa0] sm:$0xff]
    %v56 = vld [vmem:[#allocation2 + $0xa8] sm:$0xff]
    %v57 = vld [vmem:[#allocation2 + $0xb0] sm:$0xff]
    %v58 = vld [vmem:[#allocation2 + $0xb8] sm:$0xff]
    %v59 = vld [vmem:[#allocation2 + $0xc0] sm:$0xff]
    %v60 = vld [vmem:[#allocation2 + $0xc8] sm:$0xff]
    %v61 = vld [vmem:[#allocation2 + $0xd0] sm:$0xff]
    %v62 = vld [vmem:[#allocation2 + $0xd8] sm:$0xff]
    %v63 = vld [vmem:[#allocation2 + $0xe0] sm:$0xff]
    %v64 = vld [vmem:[#allocation2 + $0xe8] sm:$0xff]
    %v65 = vld [vmem:[#allocation2 + $0xf0] sm:$0xff]
    %v66 = vld [vmem:[#allocation2 + $0xf8] sm:$0xff]
    %v67 = vld [vmem:[#allocation2 + $0x100] sm:$0xff]
    %v68 = vld [vmem:[#allocation2 + $0x108] sm:$0xff]
    %v69 = vld [vmem:[#allocation2 + $0x110] sm:$0xff]
    %v70 = vld [vmem:[#allocation2 + $0x118] sm:$0xff]
    %v71 = vld [vmem:[#allocation2 + $0x120] sm:$0xff]
    %v72 = vld [vmem:[#allocation2 + $0x128] sm:$0xff]
    %v73 = vld [vmem:[#allocation2 + $0x130] sm:$0xff]
    %v74 = vld [vmem:[#allocation2 + $0x138] sm:$0xff]
    %v75 = vld [vmem:[#allocation2 + $0x140] sm:$0xff]
    %v76 = vld [vmem:[#allocation2 + $0x148] sm:$0xff]
    %v77 = vld [vmem:[#allocation2 + $0x150] sm:$0xff]
    %v78 = vld [vmem:[#allocation2 + $0x158] sm:$0xff]
    %v79 = vld [vmem:[#allocation2 + $0x160] sm:$0xff]
    %v80 = vld [vmem:[#allocation2 + $0x168] sm:$0xff]
    %v81 = vld [vmem:[#allocation2 + $0x170] sm:$0xff]
    %v82 = vld [vmem:[#allocation2 + $0x178] sm:$0xff]
    %v83 = vld [vmem:[#allocation2 + $0x180] sm:$0xff]
    %v84 = vld [vmem:[#allocation2 + $0x188] sm:$0xff]
    %v85 = vld [vmem:[#allocation2 + $0x190] sm:$0xff]
    %v86 = vld [vmem:[#allocation2 + $0x198] sm:$0xff]
    %v87 = vld [vmem:[#allocation2 + $0x1a0] sm:$0xff]
    %v88 = vld [vmem:[#allocation2 + $0x1a8] sm:$0xff]
    %v89 = vld [vmem:[#allocation2 + $0x1b0] sm:$0xff]
    %v90 = vld [vmem:[#allocation2 + $0x1b8] sm:$0xff]
    %v91 = vld [vmem:[#allocation2 + $0x1c0] sm:$0xff]
    %v92 = vld [vmem:[#allocation2 + $0x1c8] sm:$0xff]
    %v93 = vld [vmem:[#allocation2 + $0x1d0] sm:$0xff]
    %v94 = vld [vmem:[#allocation2 + $0x1d8] sm:$0xff]
    %v95 = vld [vmem:[#allocation2 + $0x1e0] sm:$0xff]
    %v96 = vld [vmem:[#allocation2 + $0x1e8] sm:$0xff]
    %v97 = vld [vmem:[#allocation2 + $0x1f0] sm:$0xff]
    %v98 = vld [vmem:[#allocation2 + $0x1f8] sm:$0xff]
    %v99 = vadd.f32 %v35, %v36
    %100 = vadd.xlane.f32.xlu0 %v99
    %v101 = vpop.xlane.xlu0 %100
    %v102 = vadd.f32 %v37, %v38
    %103 = vadd.xlane.f32.xlu0 %v102
    %v104 = vpop.xlane.xlu0 %103
    %v105 = vadd.f32 %v39, %v40
    %106 = vadd.xlane.f32.xlu0 %v105
    %v107 = vpop.xlane.xlu0 %106
    %v108 = vadd.f32 %v41, %v42
    %109 = vadd.xlane.f32.xlu0 %v108
    %v110 = vpop.xlane.xlu0 %109
    %v111 = vadd.f32 %v43, %v44
    %112 = vadd.xlane.f32.xlu0 %v111
    %v113 = vpop.xlane.xlu0 %112
    %v114 = vadd.f32 %v45, %v46
    %115 = vadd.xlane.f32.xlu0 %v114
    %v116 = vpop.xlane.xlu0 %115
    %v117 = vadd.f32 %v47, %v48
    %118 = vadd.xlane.f32.xlu0 %v117
    %v119 = vpop.xlane.xlu0 %118
    %v120 = vadd.f32 %v49, %v50
    %121 = vadd.xlane.f32.xlu0 %v120
    %v122 = vpop.xlane.xlu0 %121
    %v123 = vadd.f32 %v51, %v52
    %124 = vadd.xlane.f32.xlu0 %v123
    %v125 = vpop.xlane.xlu0 %124
    %v126 = vadd.f32 %v53, %v54
    %127 = vadd.xlane.f32.xlu0 %v126
    %v128 = vpop.xlane.xlu0 %127
    %v129 = vadd.f32 %v55, %v56
    %130 = vadd.xlane.f32.xlu0 %v129
    %v131 = vpop.xlane.xlu0 %130
    %v132 = vadd.f32 %v57, %v58
    %133 = vadd.xlane.f32.xlu0 %v132
    %v134 = vpop.xlane.xlu0 %133
    %v135 = vadd.f32 %v59, %v60
    %136 = vadd.xlane.f32.xlu0 %v135
    %v137 = vpop.xlane.xlu0 %136
    %v138 = vadd.f32 %v61, %v62
    %139 = vadd.xlane.f32.xlu0 %v138
    %v140 = vpop.xlane.xlu0 %139
    %v141 = vadd.f32 %v63, %v64
    %142 = vadd.xlane.f32.xlu0 %v141
    %v143 = vpop.xlane.xlu0 %142
    %v144 = vadd.f32 %v65, %v66
    %145 = vadd.xlane.f32.xlu0 %v144
    %v146 = vpop.xlane.xlu0 %145
    %v147 = vadd.f32 %v67, %v68
    %148 = vadd.xlane.f32.xlu0 %v147
    %v149 = vpop.xlane.xlu0 %148
    %v150 = vadd.f32 %v69, %v70
    %151 = vadd.xlane.f32.xlu0 %v150
    %v152 = vpop.xlane.xlu0 %151
    %v153 = vadd.f32 %v71, %v72
    %154 = vadd.xlane.f32.xlu0 %v153
    %v155 = vpop.xlane.xlu0 %154
    %v156 = vadd.f32 %v73, %v74
    %157 = vadd.xlane.f32.xlu0 %v156
    %v158 = vpop.xlane.xlu0 %157
    %v159 = vadd.f32 %v75, %v76
    %160 = vadd.xlane.f32.xlu0 %v159
    %v161 = vpop.xlane.xlu0 %160
    %v162 = vadd.f32 %v77, %v78
    %163 = vadd.xlane.f32.xlu0 %v162
    %v164 = vpop.xlane.xlu0 %163
    %v165 = vadd.f32 %v79, %v80
    %166 = vadd.xlane.f32.xlu0 %v165
    %v167 = vpop.xlane.xlu0 %166
    %v168 = vadd.f32 %v81, %v82
    %169 = vadd.xlane.f32.xlu0 %v168
    %v170 = vpop.xlane.xlu0 %169
    %v171 = vadd.f32 %v83, %v84
    %172 = vadd.xlane.f32.xlu0 %v171
    %v173 = vpop.xlane.xlu0 %172
    %v174 = vadd.f32 %v85, %v86
    %175 = vadd.xlane.f32.xlu0 %v174
    %v176 = vpop.xlane.xlu0 %175
    %v177 = vadd.f32 %v87, %v88
    %178 = vadd.xlane.f32.xlu0 %v177
    %v179 = vpop.xlane.xlu0 %178
    %v180 = vadd.f32 %v89, %v90
    %181 = vadd.xlane.f32.xlu0 %v180
    %v182 = vpop.xlane.xlu0 %181
    %v183 = vadd.f32 %v91, %v92
    %184 = vadd.xlane.f32.xlu0 %v183
    %v185 = vpop.xlane.xlu0 %184
    %v186 = vadd.f32 %v93, %v94
    %187 = vadd.xlane.f32.xlu0 %v186
    %v188 = vpop.xlane.xlu0 %187
    %v189 = vadd.f32 %v95, %v96
    %190 = vadd.xlane.f32.xlu0 %v189
    %v191 = vpop.xlane.xlu0 %190
    %v192 = vadd.f32 %v97, %v98
    %193 = vadd.xlane.f32.xlu0 %v192
    %v194 = vpop.xlane.xlu0 %193
    %v195 = vrcp.pop 256.0
    %v196 = vmul.f32 %v101, %v195
    %v197 = vmul.f32 %v104, %v195
    %v198 = vmul.f32 %v107, %v195
    %v199 = vmul.f32 %v110, %v195
    %v200 = vmul.f32 %v113, %v195
    %v201 = vmul.f32 %v116, %v195
    %v202 = vmul.f32 %v119, %v195
    %v203 = vmul.f32 %v122, %v195
    %v204 = vmul.f32 %v125, %v195
    %v205 = vmul.f32 %v128, %v195
    %v206 = vmul.f32 %v131, %v195
    %v207 = vmul.f32 %v134, %v195
    %v208 = vmul.f32 %v137, %v195
    %v209 = vmul.f32 %v140, %v195
    %v210 = vmul.f32 %v143, %v195
    %v211 = vmul.f32 %v146, %v195
    %v212 = vmul.f32 %v149, %v195
    %v213 = vmul.f32 %v152, %v195
    %v214 = vmul.f32 %v155, %v195
    %v215 = vmul.f32 %v158, %v195
    %v216 = vmul.f32 %v161, %v195
    %v217 = vmul.f32 %v164, %v195
    %v218 = vmul.f32 %v167, %v195
    %v219 = vmul.f32 %v170, %v195
    %v220 = vmul.f32 %v173, %v195
    %v221 = vmul.f32 %v176, %v195
    %v222 = vmul.f32 %v179, %v195
    %v223 = vmul.f32 %v182, %v195
    %v224 = vmul.f32 %v185, %v195
    %v225 = vmul.f32 %v188, %v195
    %v226 = vmul.f32 %v191, %v195
    %v227 = vmul.f32 %v194, %v195
    %v228 = vld [vmem:[%s1] sm:$0xff]
    %v229 = vld [vmem:[%s1 + $0x8] sm:$0xff]
    %v230 = vld [vmem:[%s1 + $0x10] sm:$0xff]
    %v231 = vld [vmem:[%s1 + $0x18] sm:$0xff]
    %v232 = vld [vmem:[%s2] sm:$0x3]
    %v233 = vmul.f32 %v196, %v228
    %v234 = vmul.f32 %v197, %v229
    %v235 = vmul.f32 %v198, %v230
    %v236 = vmul.f32 %v199, %v231
    %v237 = vmul.f32 %v200, %v228
    %v238 = vmul.f32 %v201, %v229
    %v239 = vmul.f32 %v202, %v230
    %v240 = vmul.f32 %v203, %v231
    %v241 = vmul.f32 %v204, %v228
    %v242 = vmul.f32 %v205, %v229
    %v243 = vmul.f32 %v206, %v230
    %v244 = vmul.f32 %v207, %v231
    %v245 = vmul.f32 %v208, %v228
    %v246 = vmul.f32 %v209, %v229
    %v247 = vmul.f32 %v210, %v230
    %v248 = vmul.f32 %v211, %v231
    %v249 = vmul.f32 %v212, %v228
    %v250 = vmul.f32 %v213, %v229
    %v251 = vmul.f32 %v214, %v230
    %v252 = vmul.f32 %v215, %v231
    %v253 = vmul.f32 %v216, %v228
    %v254 = vmul.f32 %v217, %v229
    %v255 = vmul.f32 %v218, %v230
    %v256 = vmul.f32 %v219, %v231
    %v257 = vmul.f32 %v220, %v228
    %v258 = vmul.f32 %v221, %v229
    %v259 = vmul.f32 %v222, %v230
    %v260 = vmul.f32 %v223, %v231
    %v261 = vmul.f32 %v224, %v228
    %v262 = vmul.f32 %v225, %v229
    %v263 = vmul.f32 %v226, %v230
    %v264 = vmul.f32 %v227, %v231
    %297 = vset.pattern.permute.xlu0 0
    %298 = vperm.xlu0 %297, %v233
    %v299 = vpop.permute.xlu0 %298
    %300 = vset.pattern.permute.xlu0 0
    %301 = vperm.xlu0 %300, %v234
    %v302 = vpop.permute.xlu0 %301
    %303 = vset.pattern.permute.xlu0 0
    %304 = vperm.xlu0 %303, %v235
    %v305 = vpop.permute.xlu0 %304
    %306 = vset.pattern.permute.xlu0 0
    %307 = vperm.xlu0 %306, %v236
    %v308 = vpop.permute.xlu0 %307
    %309 = vset.pattern.permute.xlu0 0
    %310 = vperm.xlu0 %309, %v237
    %v311 = vpop.permute.xlu0 %310
    %312 = vset.pattern.permute.xlu0 0
    %313 = vperm.xlu0 %312, %v238
    %v314 = vpop.permute.xlu0 %313
    %315 = vset.pattern.permute.xlu0 0
    %316 = vperm.xlu0 %315, %v239
    %v317 = vpop.permute.xlu0 %316
    %318 = vset.pattern.permute.xlu0 0
    %319 = vperm.xlu0 %318, %v240
    %v320 = vpop.permute.xlu0 %319
    %321 = vset.pattern.permute.xlu0 0
    %322 = vperm.xlu0 %321, %v241
    %v323 = vpop.permute.xlu0 %322
    %324 = vset.pattern.permute.xlu0 0
    %325 = vperm.xlu0 %324, %v242
    %v326 = vpop.permute.xlu0 %325
    %327 = vset.pattern.permute.xlu0 0
    %328 = vperm.xlu0 %327, %v243
    %v329 = vpop.permute.xlu0 %328
    %330 = vset.pattern.permute.xlu0 0
    %331 = vperm.xlu0 %330, %v244
    %v332 = vpop.permute.xlu0 %331
    %333 = vset.pattern.permute.xlu0 0
    %334 = vperm.xlu0 %333, %v245
    %v335 = vpop.permute.xlu0 %334
    %336 = vset.pattern.permute.xlu0 0
    %337 = vperm.xlu0 %336, %v246
    %v338 = vpop.permute.xlu0 %337
    %339 = vset.pattern.permute.xlu0 0
    %340 = vperm.xlu0 %339, %v247
    %v341 = vpop.permute.xlu0 %340
    %342 = vset.pattern.permute.xlu0 0
    %343 = vperm.xlu0 %342, %v248
    %v344 = vpop.permute.xlu0 %343
    %345 = vset.pattern.permute.xlu0 0
    %346 = vperm.xlu0 %345, %v249
    %v347 = vpop.permute.xlu0 %346
    %348 = vset.pattern.permute.xlu0 0
    %349 = vperm.xlu0 %348, %v250
    %v350 = vpop.permute.xlu0 %349
    %351 = vset.pattern.permute.xlu0 0
    %352 = vperm.xlu0 %351, %v251
    %v353 = vpop.permute.xlu0 %352
    %354 = vset.pattern.permute.xlu0 0
    %355 = vperm.xlu0 %354, %v252
    %v356 = vpop.permute.xlu0 %355
    %357 = vset.pattern.permute.xlu0 0
    %358 = vperm.xlu0 %357, %v253
    %v359 = vpop.permute.xlu0 %358
    %360 = vset.pattern.permute.xlu0 0
    %361 = vperm.xlu0 %360, %v254
    %v362 = vpop.permute.xlu0 %361
    %363 = vset.pattern.permute.xlu0 0
    %364 = vperm.xlu0 %363, %v255
    %v365 = vpop.permute.xlu0 %364
    %366 = vset.pattern.permute.xlu0 0
    %367 = vperm.xlu0 %366, %v256
    %v368 = vpop.permute.xlu0 %367
    %369 = vset.pattern.permute.xlu0 0
    %370 = vperm.xlu0 %369, %v257
    %v371 = vpop.permute.xlu0 %370
    %372 = vset.pattern.permute.xlu0 0
    %373 = vperm.xlu0 %372, %v258
    %v374 = vpop.permute.xlu0 %373
    %375 = vset.pattern.permute.xlu0 0
    %376 = vperm.xlu0 %375, %v259
    %v377 = vpop.permute.xlu0 %376
    %378 = vset.pattern.permute.xlu0 0
    %379 = vperm.xlu0 %378, %v260
    %v380 = vpop.permute.xlu0 %379
    %381 = vset.pattern.permute.xlu0 0
    %382 = vperm.xlu0 %381, %v261
    %v383 = vpop.permute.xlu0 %382
    %384 = vset.pattern.permute.xlu0 0
    %385 = vperm.xlu0 %384, %v262
    %v386 = vpop.permute.xlu0 %385
    %387 = vset.pattern.permute.xlu0 0
    %388 = vperm.xlu0 %387, %v263
    %v389 = vpop.permute.xlu0 %388
    %390 = vset.pattern.permute.xlu0 0
    %391 = vperm.xlu0 %390, %v264
    %v392 = vpop.permute.xlu0 %391
    %v393 = vlaneseq
    %v394 = vand.u32 %v393, 127
    %v395 = vlaneseq
    %v396 = vshrl.u32 %v395, 7
    %v397 = vsub.s32 %v394, %v396
    %v398 = vrot.slane %v299, %v397
    %v399 = vadd.s32 %v394, 4294967288
    %v400 = vlaneseq
    %v401 = vshrl.u32 %v400, 7
    %v402 = vsub.s32 %v399, %v401
    %v403 = vrot.slane %v302, %v402
    %vm404 = vcmask 130112
    %v405 = vsel %vm404, %v403, %v398
    %v406 = vadd.s32 %v394, 4294967280
    %v407 = vlaneseq
    %v408 = vshrl.u32 %v407, 7
    %v409 = vsub.s32 %v406, %v408
    %v410 = vrot.slane %v305, %v409
    %vm411 = vcmask 195712
    %v412 = vsel %vm411, %v410, %v405
    %v413 = vadd.s32 %v394, 4294967272
    %v414 = vlaneseq
    %v415 = vshrl.u32 %v414, 7
    %v416 = vsub.s32 %v413, %v415
    %v417 = vrot.slane %v308, %v416
    %vm418 = vcmask 261312
    %v419 = vsel %vm418, %v417, %v412
    %v420 = vlaneseq
    %v421 = vshrl.u32 %v420, 7
    %v422 = vsub.s32 %v394, %v421
    %v423 = vrot.slane %v311, %v422
    %v424 = vlaneseq
    %v425 = vshrl.u32 %v424, 7
    %v426 = vsub.s32 %v399, %v425
    %v427 = vrot.slane %v314, %v426
    %v428 = vsel %vm404, %v427, %v423
    %v429 = vlaneseq
    %v430 = vshrl.u32 %v429, 7
    %v431 = vsub.s32 %v406, %v430
    %v432 = vrot.slane %v317, %v431
    %v433 = vsel %vm411, %v432, %v428
    %v434 = vlaneseq
    %v435 = vshrl.u32 %v434, 7
    %v436 = vsub.s32 %v413, %v435
    %v437 = vrot.slane %v320, %v436
    %v438 = vsel %vm418, %v437, %v433
    %v439 = vlaneseq
    %v440 = vshrl.u32 %v439, 7
    %v441 = vsub.s32 %v394, %v440
    %v442 = vrot.slane %v323, %v441
    %v443 = vlaneseq
    %v444 = vshrl.u32 %v443, 7
    %v445 = vsub.s32 %v399, %v444
    %v446 = vrot.slane %v326, %v445
    %v447 = vsel %vm404, %v446, %v442
    %v448 = vlaneseq
    %v449 = vshrl.u32 %v448, 7
    %v450 = vsub.s32 %v406, %v449
    %v451 = vrot.slane %v329, %v450
    %v452 = vsel %vm411, %v451, %v447
    %v453 = vlaneseq
    %v454 = vshrl.u32 %v453, 7
    %v455 = vsub.s32 %v413, %v454
    %v456 = vrot.slane %v332, %v455
    %v457 = vsel %vm418, %v456, %v452
    %v458 = vlaneseq
    %v459 = vshrl.u32 %v458, 7
    %v460 = vsub.s32 %v394, %v459
    %v461 = vrot.slane %v335, %v460
    %v462 = vlaneseq
    %v463 = vshrl.u32 %v462, 7
    %v464 = vsub.s32 %v399, %v463
    %v465 = vrot.slane %v338, %v464
    %v466 = vsel %vm404, %v465, %v461
    %v467 = vlaneseq
    %v468 = vshrl.u32 %v467, 7
    %v469 = vsub.s32 %v406, %v468
    %v470 = vrot.slane %v341, %v469
    %v471 = vsel %vm411, %v470, %v466
    %v472 = vlaneseq
    %v473 = vshrl.u32 %v472, 7
    %v474 = vsub.s32 %v413, %v473
    %v475 = vrot.slane %v344, %v474
    %v476 = vsel %vm418, %v475, %v471
    %v477 = vlaneseq
    %v478 = vshrl.u32 %v477, 7
    %v479 = vsub.s32 %v394, %v478
    %v480 = vrot.slane %v347, %v479
    %v481 = vlaneseq
    %v482 = vshrl.u32 %v481, 7
    %v483 = vsub.s32 %v399, %v482
    %v484 = vrot.slane %v350, %v483
    %v485 = vsel %vm404, %v484, %v480
    %v486 = vlaneseq
    %v487 = vshrl.u32 %v486, 7
    %v488 = vsub.s32 %v406, %v487
    %v489 = vrot.slane %v353, %v488
    %v490 = vsel %vm411, %v489, %v485
    %v491 = vlaneseq
    %v492 = vshrl.u32 %v491, 7
    %v493 = vsub.s32 %v413, %v492
    %v494 = vrot.slane %v356, %v493
    %v495 = vsel %vm418, %v494, %v490
    %v496 = vlaneseq
    %v497 = vshrl.u32 %v496, 7
    %v498 = vsub.s32 %v394, %v497
    %v499 = vrot.slane %v359, %v498
    %v500 = vlaneseq
    %v501 = vshrl.u32 %v500, 7
    %v502 = vsub.s32 %v399, %v501
    %v503 = vrot.slane %v362, %v502
    %v504 = vsel %vm404, %v503, %v499
    %v505 = vlaneseq
    %v506 = vshrl.u32 %v505, 7
    %v507 = vsub.s32 %v406, %v506
    %v508 = vrot.slane %v365, %v507
    %v509 = vsel %vm411, %v508, %v504
    %v510 = vlaneseq
    %v511 = vshrl.u32 %v510, 7
    %v512 = vsub.s32 %v413, %v511
    %v513 = vrot.slane %v368, %v512
    %v514 = vsel %vm418, %v513, %v509
    %v515 = vlaneseq
    %v516 = vshrl.u32 %v515, 7
    %v517 = vsub.s32 %v394, %v516
    %v518 = vrot.slane %v371, %v517
    %v519 = vlaneseq
    %v520 = vshrl.u32 %v519, 7
    %v521 = vsub.s32 %v399, %v520
    %v522 = vrot.slane %v374, %v521
    %v523 = vsel %vm404, %v522, %v518
    %v524 = vlaneseq
    %v525 = vshrl.u32 %v524, 7
    %v526 = vsub.s32 %v406, %v525
    %v527 = vrot.slane %v377, %v526
    %v528 = vsel %vm411, %v527, %v523
    %v529 = vlaneseq
    %v530 = vshrl.u32 %v529, 7
    %v531 = vsub.s32 %v413, %v530
    %v532 = vrot.slane %v380, %v531
    %v533 = vsel %vm418, %v532, %v528
    %v534 = vlaneseq
    %v535 = vshrl.u32 %v534, 7
    %v536 = vsub.s32 %v394, %v535
    %v537 = vrot.slane %v383, %v536
    %v538 = vlaneseq
    %v539 = vshrl.u32 %v538, 7
    %v540 = vsub.s32 %v399, %v539
    %v541 = vrot.slane %v386, %v540
    %v542 = vsel %vm404, %v541, %v537
    %v543 = vlaneseq
    %v544 = vshrl.u32 %v543, 7
    %v545 = vsub.s32 %v406, %v544
    %v546 = vrot.slane %v389, %v545
    %v547 = vsel %vm411, %v546, %v542
    %v548 = vlaneseq
    %v549 = vshrl.u32 %v548, 7
    %v550 = vsub.s32 %v413, %v549
    %v551 = vrot.slane %v392, %v550
    %v552 = vsel %vm418, %v551, %v547
    %vm553 = vcmask 1041409
    %v554 = vsel %vm553, %v438, %v419
    %vm555 = vcmask 1042434
    %v556 = vsel %vm555, %v457, %v554
    %vm557 = vcmask 1043459
    %v558 = vsel %vm557, %v476, %v556
    %vm559 = vcmask 1044484
    %v560 = vsel %vm559, %v495, %v558
    %vm561 = vcmask 1045509
    %v562 = vsel %vm561, %v514, %v560
    %vm563 = vcmask 1046534
    %v564 = vsel %vm563, %v533, %v562
    %vm565 = vcmask 1047559
    %v566 = vsel %vm565, %v552, %v564
    %vm568 = vcmask 261120
    %v569 = vsel %vm568, %v566, 0.0
    %570 = vadd.xlane.f32.xlu0 %v569
    %v571 = vpop.xlane.xlu0 %570
    %572 = vset.pattern.permute.xlu0 1
    %573 = vperm.xlu0 %572, %v233
    %v574 = vpop.permute.xlu0 %573
    %575 = vset.pattern.permute.xlu0 1
    %576 = vperm.xlu0 %575, %v234
    %v577 = vpop.permute.xlu0 %576
    %578 = vset.pattern.permute.xlu0 1
    %579 = vperm.xlu0 %578, %v235
    %v580 = vpop.permute.xlu0 %579
    %581 = vset.pattern.permute.xlu0 1
    %582 = vperm.xlu0 %581, %v236
    %v583 = vpop.permute.xlu0 %582
    %584 = vset.pattern.permute.xlu0 1
    %585 = vperm.xlu0 %584, %v237
    %v586 = vpop.permute.xlu0 %585
    %587 = vset.pattern.permute.xlu0 1
    %588 = vperm.xlu0 %587, %v238
    %v589 = vpop.permute.xlu0 %588
    %590 = vset.pattern.permute.xlu0 1
    %591 = vperm.xlu0 %590, %v239
    %v592 = vpop.permute.xlu0 %591
    %593 = vset.pattern.permute.xlu0 1
    %594 = vperm.xlu0 %593, %v240
    %v595 = vpop.permute.xlu0 %594
    %596 = vset.pattern.permute.xlu0 1
    %597 = vperm.xlu0 %596, %v241
    %v598 = vpop.permute.xlu0 %597
    %599 = vset.pattern.permute.xlu0 1
    %600 = vperm.xlu0 %599, %v242
    %v601 = vpop.permute.xlu0 %600
    %602 = vset.pattern.permute.xlu0 1
    %603 = vperm.xlu0 %602, %v243
    %v604 = vpop.permute.xlu0 %603
    %605 = vset.pattern.permute.xlu0 1
    %606 = vperm.xlu0 %605, %v244
    %v607 = vpop.permute.xlu0 %606
    %608 = vset.pattern.permute.xlu0 1
    %609 = vperm.xlu0 %608, %v245
    %v610 = vpop.permute.xlu0 %609
    %611 = vset.pattern.permute.xlu0 1
    %612 = vperm.xlu0 %611, %v246
    %v613 = vpop.permute.xlu0 %612
    %614 = vset.pattern.permute.xlu0 1
    %615 = vperm.xlu0 %614, %v247
    %v616 = vpop.permute.xlu0 %615
    %617 = vset.pattern.permute.xlu0 1
    %618 = vperm.xlu0 %617, %v248
    %v619 = vpop.permute.xlu0 %618
    %620 = vset.pattern.permute.xlu0 1
    %621 = vperm.xlu0 %620, %v249
    %v622 = vpop.permute.xlu0 %621
    %623 = vset.pattern.permute.xlu0 1
    %624 = vperm.xlu0 %623, %v250
    %v625 = vpop.permute.xlu0 %624
    %626 = vset.pattern.permute.xlu0 1
    %627 = vperm.xlu0 %626, %v251
    %v628 = vpop.permute.xlu0 %627
    %629 = vset.pattern.permute.xlu0 1
    %630 = vperm.xlu0 %629, %v252
    %v631 = vpop.permute.xlu0 %630
    %632 = vset.pattern.permute.xlu0 1
    %633 = vperm.xlu0 %632, %v253
    %v634 = vpop.permute.xlu0 %633
    %635 = vset.pattern.permute.xlu0 1
    %636 = vperm.xlu0 %635, %v254
    %v637 = vpop.permute.xlu0 %636
    %638 = vset.pattern.permute.xlu0 1
    %639 = vperm.xlu0 %638, %v255
    %v640 = vpop.permute.xlu0 %639
    %641 = vset.pattern.permute.xlu0 1
    %642 = vperm.xlu0 %641, %v256
    %v643 = vpop.permute.xlu0 %642
    %644 = vset.pattern.permute.xlu0 1
    %645 = vperm.xlu0 %644, %v257
    %v646 = vpop.permute.xlu0 %645
    %647 = vset.pattern.permute.xlu0 1
    %648 = vperm.xlu0 %647, %v258
    %v649 = vpop.permute.xlu0 %648
    %650 = vset.pattern.permute.xlu0 1
    %651 = vperm.xlu0 %650, %v259
    %v652 = vpop.permute.xlu0 %651
    %653 = vset.pattern.permute.xlu0 1
    %654 = vperm.xlu0 %653, %v260
    %v655 = vpop.permute.xlu0 %654
    %656 = vset.pattern.permute.xlu0 1
    %657 = vperm.xlu0 %656, %v261
    %v658 = vpop.permute.xlu0 %657
    %659 = vset.pattern.permute.xlu0 1
    %660 = vperm.xlu0 %659, %v262
    %v661 = vpop.permute.xlu0 %660
    %662 = vset.pattern.permute.xlu0 1
    %663 = vperm.xlu0 %662, %v263
    %v664 = vpop.permute.xlu0 %663
    %665 = vset.pattern.permute.xlu0 1
    %666 = vperm.xlu0 %665, %v264
    %v667 = vpop.permute.xlu0 %666
    %v668 = vlaneseq
    %v669 = vshrl.u32 %v668, 7
    %v670 = vsub.s32 %v394, %v669
    %v671 = vrot.slane %v574, %v670
    %v672 = vlaneseq
    %v673 = vshrl.u32 %v672, 7
    %v674 = vsub.s32 %v399, %v673
    %v675 = vrot.slane %v577, %v674
    %v676 = vsel %vm404, %v675, %v671
    %v677 = vlaneseq
    %v678 = vshrl.u32 %v677, 7
    %v679 = vsub.s32 %v406, %v678
    %v680 = vrot.slane %v580, %v679
    %v681 = vsel %vm411, %v680, %v676
    %v682 = vlaneseq
    %v683 = vshrl.u32 %v682, 7
    %v684 = vsub.s32 %v413, %v683
    %v685 = vrot.slane %v583, %v684
    %v686 = vsel %vm418, %v685, %v681
    %v687 = vlaneseq
    %v688 = vshrl.u32 %v687, 7
    %v689 = vsub.s32 %v394, %v688
    %v690 = vrot.slane %v586, %v689
    %v691 = vlaneseq
    %v692 = vshrl.u32 %v691, 7
    %v693 = vsub.s32 %v399, %v692
    %v694 = vrot.slane %v589, %v693
    %v695 = vsel %vm404, %v694, %v690
    %v696 = vlaneseq
    %v697 = vshrl.u32 %v696, 7
    %v698 = vsub.s32 %v406, %v697
    %v699 = vrot.slane %v592, %v698
    %v700 = vsel %vm411, %v699, %v695
    %v701 = vlaneseq
    %v702 = vshrl.u32 %v701, 7
    %v703 = vsub.s32 %v413, %v702
    %v704 = vrot.slane %v595, %v703
    %v705 = vsel %vm418, %v704, %v700
    %v706 = vlaneseq
    %v707 = vshrl.u32 %v706, 7
    %v708 = vsub.s32 %v394, %v707
    %v709 = vrot.slane %v598, %v708
    %v710 = vlaneseq
    %v711 = vshrl.u32 %v710, 7
    %v712 = vsub.s32 %v399, %v711
    %v713 = vrot.slane %v601, %v712
    %v714 = vsel %vm404, %v713, %v709
    %v715 = vlaneseq
    %v716 = vshrl.u32 %v715, 7
    %v717 = vsub.s32 %v406, %v716
    %v718 = vrot.slane %v604, %v717
    %v719 = vsel %vm411, %v718, %v714
    %v720 = vlaneseq
    %v721 = vshrl.u32 %v720, 7
    %v722 = vsub.s32 %v413, %v721
    %v723 = vrot.slane %v607, %v722
    %v724 = vsel %vm418, %v723, %v719
    %v725 = vlaneseq
    %v726 = vshrl.u32 %v725, 7
    %v727 = vsub.s32 %v394, %v726
    %v728 = vrot.slane %v610, %v727
    %v729 = vlaneseq
    %v730 = vshrl.u32 %v729, 7
    %v731 = vsub.s32 %v399, %v730
    %v732 = vrot.slane %v613, %v731
    %v733 = vsel %vm404, %v732, %v728
    %v734 = vlaneseq
    %v735 = vshrl.u32 %v734, 7
    %v736 = vsub.s32 %v406, %v735
    %v737 = vrot.slane %v616, %v736
    %v738 = vsel %vm411, %v737, %v733
    %v739 = vlaneseq
    %v740 = vshrl.u32 %v739, 7
    %v741 = vsub.s32 %v413, %v740
    %v742 = vrot.slane %v619, %v741
    %v743 = vsel %vm418, %v742, %v738
    %v744 = vlaneseq
    %v745 = vshrl.u32 %v744, 7
    %v746 = vsub.s32 %v394, %v745
    %v747 = vrot.slane %v622, %v746
    %v748 = vlaneseq
    %v749 = vshrl.u32 %v748, 7
    %v750 = vsub.s32 %v399, %v749
    %v751 = vrot.slane %v625, %v750
    %v752 = vsel %vm404, %v751, %v747
    %v753 = vlaneseq
    %v754 = vshrl.u32 %v753, 7
    %v755 = vsub.s32 %v406, %v754
    %v756 = vrot.slane %v628, %v755
    %v757 = vsel %vm411, %v756, %v752
    %v758 = vlaneseq
    %v759 = vshrl.u32 %v758, 7
    %v760 = vsub.s32 %v413, %v759
    %v761 = vrot.slane %v631, %v760
    %v762 = vsel %vm418, %v761, %v757
    %v763 = vlaneseq
    %v764 = vshrl.u32 %v763, 7
    %v765 = vsub.s32 %v394, %v764
    %v766 = vrot.slane %v634, %v765
    %v767 = vlaneseq
    %v768 = vshrl.u32 %v767, 7
    %v769 = vsub.s32 %v399, %v768
    %v770 = vrot.slane %v637, %v769
    %v771 = vsel %vm404, %v770, %v766
    %v772 = vlaneseq
    %v773 = vshrl.u32 %v772, 7
    %v774 = vsub.s32 %v406, %v773
    %v775 = vrot.slane %v640, %v774
    %v776 = vsel %vm411, %v775, %v771
    %v777 = vlaneseq
    %v778 = vshrl.u32 %v777, 7
    %v779 = vsub.s32 %v413, %v778
    %v780 = vrot.slane %v643, %v779
    %v781 = vsel %vm418, %v780, %v776
    %v782 = vlaneseq
    %v783 = vshrl.u32 %v782, 7
    %v784 = vsub.s32 %v394, %v783
    %v785 = vrot.slane %v646, %v784
    %v786 = vlaneseq
    %v787 = vshrl.u32 %v786, 7
    %v788 = vsub.s32 %v399, %v787
    %v789 = vrot.slane %v649, %v788
    %v790 = vsel %vm404, %v789, %v785
    %v791 = vlaneseq
    %v792 = vshrl.u32 %v791, 7
    %v793 = vsub.s32 %v406, %v792
    %v794 = vrot.slane %v652, %v793
    %v795 = vsel %vm411, %v794, %v790
    %v796 = vlaneseq
    %v797 = vshrl.u32 %v796, 7
    %v798 = vsub.s32 %v413, %v797
    %v799 = vrot.slane %v655, %v798
    %v800 = vsel %vm418, %v799, %v795
    %v801 = vlaneseq
    %v802 = vshrl.u32 %v801, 7
    %v803 = vsub.s32 %v394, %v802
    %v804 = vrot.slane %v658, %v803
    %v805 = vlaneseq
    %v806 = vshrl.u32 %v805, 7
    %v807 = vsub.s32 %v399, %v806
    %v808 = vrot.slane %v661, %v807
    %v809 = vsel %vm404, %v808, %v804
    %v810 = vlaneseq
    %v811 = vshrl.u32 %v810, 7
    %v812 = vsub.s32 %v406, %v811
    %v813 = vrot.slane %v664, %v812
    %v814 = vsel %vm411, %v813, %v809
    %v815 = vlaneseq
    %v816 = vshrl.u32 %v815, 7
    %v817 = vsub.s32 %v413, %v816
    %v818 = vrot.slane %v667, %v817
    %v819 = vsel %vm418, %v818, %v814
    %v820 = vsel %vm553, %v705, %v686
    %v821 = vsel %vm555, %v724, %v820
    %v822 = vsel %vm557, %v743, %v821
    %v823 = vsel %vm559, %v762, %v822
    %v824 = vsel %vm561, %v781, %v823
    %v825 = vsel %vm563, %v800, %v824
    %v826 = vsel %vm565, %v819, %v825
    %v828 = vsel %vm568, %v826, 0.0
    %829 = vadd.xlane.f32.xlu0 %v828
    %v830 = vpop.xlane.xlu0 %829
    %vm831 = vcmask 7168
    %v832 = vsel %vm831, %v571, %v830
    %v833 = vmax.f32 %v832, 0.0
    %835 = vset.pattern.permute.xlu0 0
    %836 = vperm.xlu0 %835, %v833
    %v837 = vpop.permute.xlu0 %836
    %v839 = vlaneseq
    %v840 = vshrl.u32 %v839, 7
    %v841 = vsub.s32 0, %v840
    %v842 = vrot.slane %v232, %v841
    %v843 = vmul.f32 %v837, %v842
    %844 = vset.pattern.permute.xlu0 1
    %845 = vperm.xlu0 %844, %v833
    %v846 = vpop.permute.xlu0 %845
    %v848 = vlaneseq
    %v849 = vshrl.u32 %v848, 7
    %v850 = vsub.s32 1, %v849
    %v851 = vrot.slane %v232, %v850
    %v852 = vmul.f32 %v846, %v851
    %v853 = vadd.f32 %v843, %v852
    %v854 = vxor.u32 %v853, 2147483648
    %v855 = vmul.f32 %v854, 1.442695
    %v856 = vpow.pop %v855
    %v857 = vadd.f32 %v856, 1.0
    %v858 = vrcp.pop %v857
    %v859 = vmul.f32 1.0, %v858
    %v860 = vld [vmem:[%s3] sm:$0x1]
    %v862 = vlaneseq
    %v863 = vshrl.u32 %v862, 7
    %v864 = vsub.s32 0, %v863
    %v865 = vrot.slane %v860, %v864
    %v867 = vmul.f32 %v859, %v865
    %v868 = vld [vmem:[%s4] sm:$0x3]
    %v869 = vlaneseq
    %v870 = vshrl.u32 %v869, 7
    %v871 = vsub.s32 0, %v870
    %v872 = vrot.slane %v867, %v871
    %874 = vbcast.lane.b32.xlu0 %v872, 256
    %v875 = vpop.permute.xlu0 %874
    %s877 = sor.u32 256, 8
    %878 = vbcast.lane.b32.xlu0 %v872, %s877
    %v879 = vpop.permute.xlu0 %878
    %s881 = sor.u32 256, 16
    %882 = vbcast.lane.b32.xlu0 %v872, %s881
    %v883 = vpop.permute.xlu0 %882
    %s885 = sor.u32 256, 24
    %886 = vbcast.lane.b32.xlu0 %v872, %s885
    %v887 = vpop.permute.xlu0 %886
    %v888 = vlaneseq
    %v889 = vshrl.u32 %v888, 7
    %v890 = vsub.s32 1, %v889
    %v891 = vrot.slane %v867, %v890
    %893 = vbcast.lane.b32.xlu0 %v891, 256
    %v894 = vpop.permute.xlu0 %893
    %s896 = sor.u32 256, 8
    %897 = vbcast.lane.b32.xlu0 %v891, %s896
    %v898 = vpop.permute.xlu0 %897
    %s900 = sor.u32 256, 16
    %901 = vbcast.lane.b32.xlu0 %v891, %s900
    %v902 = vpop.permute.xlu0 %901
    %s904 = sor.u32 256, 24
    %905 = vbcast.lane.b32.xlu0 %v891, %s904
    %v906 = vpop.permute.xlu0 %905
    %v907 = vlaneseq
    %v908 = vshrl.u32 %v907, 7
    %v909 = vsub.s32 2, %v908
    %v910 = vrot.slane %v867, %v909
    %912 = vbcast.lane.b32.xlu0 %v910, 256
    %v913 = vpop.permute.xlu0 %912
    %s915 = sor.u32 256, 8
    %916 = vbcast.lane.b32.xlu0 %v910, %s915
    %v917 = vpop.permute.xlu0 %916
    %s919 = sor.u32 256, 16
    %920 = vbcast.lane.b32.xlu0 %v910, %s919
    %v921 = vpop.permute.xlu0 %920
    %s923 = sor.u32 256, 24
    %924 = vbcast.lane.b32.xlu0 %v910, %s923
    %v925 = vpop.permute.xlu0 %924
    %v926 = vlaneseq
    %v927 = vshrl.u32 %v926, 7
    %v928 = vsub.s32 3, %v927
    %v929 = vrot.slane %v867, %v928
    %931 = vbcast.lane.b32.xlu0 %v929, 256
    %v932 = vpop.permute.xlu0 %931
    %s934 = sor.u32 256, 8
    %935 = vbcast.lane.b32.xlu0 %v929, %s934
    %v936 = vpop.permute.xlu0 %935
    %s938 = sor.u32 256, 16
    %939 = vbcast.lane.b32.xlu0 %v929, %s938
    %v940 = vpop.permute.xlu0 %939
    %s942 = sor.u32 256, 24
    %943 = vbcast.lane.b32.xlu0 %v929, %s942
    %v944 = vpop.permute.xlu0 %943
    %v945 = vlaneseq
    %v946 = vshrl.u32 %v945, 7
    %v947 = vsub.s32 4, %v946
    %v948 = vrot.slane %v867, %v947
    %950 = vbcast.lane.b32.xlu0 %v948, 256
    %v951 = vpop.permute.xlu0 %950
    %s953 = sor.u32 256, 8
    %954 = vbcast.lane.b32.xlu0 %v948, %s953
    %v955 = vpop.permute.xlu0 %954
    %s957 = sor.u32 256, 16
    %958 = vbcast.lane.b32.xlu0 %v948, %s957
    %v959 = vpop.permute.xlu0 %958
    %s961 = sor.u32 256, 24
    %962 = vbcast.lane.b32.xlu0 %v948, %s961
    %v963 = vpop.permute.xlu0 %962
    %v964 = vlaneseq
    %v965 = vshrl.u32 %v964, 7
    %v966 = vsub.s32 5, %v965
    %v967 = vrot.slane %v867, %v966
    %969 = vbcast.lane.b32.xlu0 %v967, 256
    %v970 = vpop.permute.xlu0 %969
    %s972 = sor.u32 256, 8
    %973 = vbcast.lane.b32.xlu0 %v967, %s972
    %v974 = vpop.permute.xlu0 %973
    %s976 = sor.u32 256, 16
    %977 = vbcast.lane.b32.xlu0 %v967, %s976
    %v978 = vpop.permute.xlu0 %977
    %s980 = sor.u32 256, 24
    %981 = vbcast.lane.b32.xlu0 %v967, %s980
    %v982 = vpop.permute.xlu0 %981
    %v983 = vlaneseq
    %v984 = vshrl.u32 %v983, 7
    %v985 = vsub.s32 6, %v984
    %v986 = vrot.slane %v867, %v985
    %988 = vbcast.lane.b32.xlu0 %v986, 256
    %v989 = vpop.permute.xlu0 %988
    %s991 = sor.u32 256, 8
    %992 = vbcast.lane.b32.xlu0 %v986, %s991
    %v993 = vpop.permute.xlu0 %992
    %s995 = sor.u32 256, 16
    %996 = vbcast.lane.b32.xlu0 %v986, %s995
    %v997 = vpop.permute.xlu0 %996
    %s999 = sor.u32 256, 24
    %1000 = vbcast.lane.b32.xlu0 %v986, %s999
    %v1001 = vpop.permute.xlu0 %1000
    %v1002 = vlaneseq
    %v1003 = vshrl.u32 %v1002, 7
    %v1004 = vsub.s32 7, %v1003
    %v1005 = vrot.slane %v867, %v1004
    %1007 = vbcast.lane.b32.xlu0 %v1005, 256
    %v1008 = vpop.permute.xlu0 %1007
    %s1010 = sor.u32 256, 8
    %1011 = vbcast.lane.b32.xlu0 %v1005, %s1010
    %v1012 = vpop.permute.xlu0 %1011
    %s1014 = sor.u32 256, 16
    %1015 = vbcast.lane.b32.xlu0 %v1005, %s1014
    %v1016 = vpop.permute.xlu0 %1015
    %s1018 = sor.u32 256, 24
    %1019 = vbcast.lane.b32.xlu0 %v1005, %s1018
    %v1020 = vpop.permute.xlu0 %1019
    %v1021 = vmul.f32 %v35, %v875
    %v1022 = vmul.f32 %v36, %v875
    %v1023 = vmul.f32 %v37, %v879
    %v1024 = vmul.f32 %v38, %v879
    %v1025 = vmul.f32 %v39, %v883
    %v1026 = vmul.f32 %v40, %v883
    %v1027 = vmul.f32 %v41, %v887
    %v1028 = vmul.f32 %v42, %v887
    %v1029 = vmul.f32 %v43, %v894
    %v1030 = vmul.f32 %v44, %v894
    %v1031 = vmul.f32 %v45, %v898
    %v1032 = vmul.f32 %v46, %v898
    %v1033 = vmul.f32 %v47, %v902
    %v1034 = vmul.f32 %v48, %v902
    %v1035 = vmul.f32 %v49, %v906
    %v1036 = vmul.f32 %v50, %v906
    %v1037 = vmul.f32 %v51, %v913
    %v1038 = vmul.f32 %v52, %v913
    %v1039 = vmul.f32 %v53, %v917
    %v1040 = vmul.f32 %v54, %v917
    %v1041 = vmul.f32 %v55, %v921
    %v1042 = vmul.f32 %v56, %v921
    %v1043 = vmul.f32 %v57, %v925
    %v1044 = vmul.f32 %v58, %v925
    %v1045 = vmul.f32 %v59, %v932
    %v1046 = vmul.f32 %v60, %v932
    %v1047 = vmul.f32 %v61, %v936
    %v1048 = vmul.f32 %v62, %v936
    %v1049 = vmul.f32 %v63, %v940
    %v1050 = vmul.f32 %v64, %v940
    %v1051 = vmul.f32 %v65, %v944
    %v1052 = vmul.f32 %v66, %v944
    %v1053 = vmul.f32 %v67, %v951
    %v1054 = vmul.f32 %v68, %v951
    %v1055 = vmul.f32 %v69, %v955
    %v1056 = vmul.f32 %v70, %v955
    %v1057 = vmul.f32 %v71, %v959
    %v1058 = vmul.f32 %v72, %v959
    %v1059 = vmul.f32 %v73, %v963
    %v1060 = vmul.f32 %v74, %v963
    %v1061 = vmul.f32 %v75, %v970
    %v1062 = vmul.f32 %v76, %v970
    %v1063 = vmul.f32 %v77, %v974
    %v1064 = vmul.f32 %v78, %v974
    %v1065 = vmul.f32 %v79, %v978
    %v1066 = vmul.f32 %v80, %v978
    %v1067 = vmul.f32 %v81, %v982
    %v1068 = vmul.f32 %v82, %v982
    %v1069 = vmul.f32 %v83, %v989
    %v1070 = vmul.f32 %v84, %v989
    %v1071 = vmul.f32 %v85, %v993
    %v1072 = vmul.f32 %v86, %v993
    %v1073 = vmul.f32 %v87, %v997
    %v1074 = vmul.f32 %v88, %v997
    %v1075 = vmul.f32 %v89, %v1001
    %v1076 = vmul.f32 %v90, %v1001
    %v1077 = vmul.f32 %v91, %v1008
    %v1078 = vmul.f32 %v92, %v1008
    %v1079 = vmul.f32 %v93, %v1012
    %v1080 = vmul.f32 %v94, %v1012
    %v1081 = vmul.f32 %v95, %v1016
    %v1082 = vmul.f32 %v96, %v1016
    %v1083 = vmul.f32 %v97, %v1020
    %v1084 = vmul.f32 %v98, %v1020
    %v1086 = vlaneseq
    %v1087 = vshrl.u32 %v1086, 7
    %v1088 = vsub.s32 0, %v1087
    %v1089 = vrot.slane %v868, %v1088
    %v1090 = vlaneseq
    %v1091 = vshrl.u32 %v1090, 7
    %v1092 = vsub.s32 1, %v1091
    %v1093 = vrot.slane %v868, %v1092
    %v1096 = vmul.f32 %v1021, %v1089
    %v1097 = vmul.f32 %v1022, %v1093
    %v1098 = vmul.f32 %v1023, %v1089
    %v1099 = vmul.f32 %v1024, %v1093
    %v1100 = vmul.f32 %v1025, %v1089
    %v1101 = vmul.f32 %v1026, %v1093
    %v1102 = vmul.f32 %v1027, %v1089
    %v1103 = vmul.f32 %v1028, %v1093
    %v1104 = vmul.f32 %v1029, %v1089
    %v1105 = vmul.f32 %v1030, %v1093
    %v1106 = vmul.f32 %v1031, %v1089
    %v1107 = vmul.f32 %v1032, %v1093
    %v1108 = vmul.f32 %v1033, %v1089
    %v1109 = vmul.f32 %v1034, %v1093
    %v1110 = vmul.f32 %v1035, %v1089
    %v1111 = vmul.f32 %v1036, %v1093
    %v1112 = vmul.f32 %v1037, %v1089
    %v1113 = vmul.f32 %v1038, %v1093
    %v1114 = vmul.f32 %v1039, %v1089
    %v1115 = vmul.f32 %v1040, %v1093
    %v1116 = vmul.f32 %v1041, %v1089
    %v1117 = vmul.f32 %v1042, %v1093
    %v1118 = vmul.f32 %v1043, %v1089
    %v1119 = vmul.f32 %v1044, %v1093
    %v1120 = vmul.f32 %v1045, %v1089
    %v1121 = vmul.f32 %v1046, %v1093
    %v1122 = vmul.f32 %v1047, %v1089
    %v1123 = vmul.f32 %v1048, %v1093
    %v1124 = vmul.f32 %v1049, %v1089
    %v1125 = vmul.f32 %v1050, %v1093
    %v1126 = vmul.f32 %v1051, %v1089
    %v1127 = vmul.f32 %v1052, %v1093
    %v1128 = vmul.f32 %v1053, %v1089
    %v1129 = vmul.f32 %v1054, %v1093
    %v1130 = vmul.f32 %v1055, %v1089
    %v1131 = vmul.f32 %v1056, %v1093
    %v1132 = vmul.f32 %v1057, %v1089
    %v1133 = vmul.f32 %v1058, %v1093
    %v1134 = vmul.f32 %v1059, %v1089
    %v1135 = vmul.f32 %v1060, %v1093
    %v1136 = vmul.f32 %v1061, %v1089
    %v1137 = vmul.f32 %v1062, %v1093
    %v1138 = vmul.f32 %v1063, %v1089
    %v1139 = vmul.f32 %v1064, %v1093
    %v1140 = vmul.f32 %v1065, %v1089
    %v1141 = vmul.f32 %v1066, %v1093
    %v1142 = vmul.f32 %v1067, %v1089
    %v1143 = vmul.f32 %v1068, %v1093
    %v1144 = vmul.f32 %v1069, %v1089
    %v1145 = vmul.f32 %v1070, %v1093
    %v1146 = vmul.f32 %v1071, %v1089
    %v1147 = vmul.f32 %v1072, %v1093
    %v1148 = vmul.f32 %v1073, %v1089
    %v1149 = vmul.f32 %v1074, %v1093
    %v1150 = vmul.f32 %v1075, %v1089
    %v1151 = vmul.f32 %v1076, %v1093
    %v1152 = vmul.f32 %v1077, %v1089
    %v1153 = vmul.f32 %v1078, %v1093
    %v1154 = vmul.f32 %v1079, %v1089
    %v1155 = vmul.f32 %v1080, %v1093
    %v1156 = vmul.f32 %v1081, %v1089
    %v1157 = vmul.f32 %v1082, %v1093
    %v1158 = vmul.f32 %v1083, %v1089
    %v1159 = vmul.f32 %v1084, %v1093
    %1160 = vst [vmem:[#allocation5] sm:$0xff] %v1096
    %1161 = vst [vmem:[#allocation5 + $0x8] sm:$0xff] %v1097
    %1162 = vst [vmem:[#allocation5 + $0x10] sm:$0xff] %v1098
    %1163 = vst [vmem:[#allocation5 + $0x18] sm:$0xff] %v1099
    %1164 = vst [vmem:[#allocation5 + $0x20] sm:$0xff] %v1100
    %1165 = vst [vmem:[#allocation5 + $0x28] sm:$0xff] %v1101
    %1166 = vst [vmem:[#allocation5 + $0x30] sm:$0xff] %v1102
    %1167 = vst [vmem:[#allocation5 + $0x38] sm:$0xff] %v1103
    %1168 = vst [vmem:[#allocation5 + $0x40] sm:$0xff] %v1104
    %1169 = vst [vmem:[#allocation5 + $0x48] sm:$0xff] %v1105
    %1170 = vst [vmem:[#allocation5 + $0x50] sm:$0xff] %v1106
    %1171 = vst [vmem:[#allocation5 + $0x58] sm:$0xff] %v1107
    %1172 = vst [vmem:[#allocation5 + $0x60] sm:$0xff] %v1108
    %1173 = vst [vmem:[#allocation5 + $0x68] sm:$0xff] %v1109
    %1174 = vst [vmem:[#allocation5 + $0x70] sm:$0xff] %v1110
    %1175 = vst [vmem:[#allocation5 + $0x78] sm:$0xff] %v1111
    %1176 = vst [vmem:[#allocation5 + $0x80] sm:$0xff] %v1112
    %1177 = vst [vmem:[#allocation5 + $0x88] sm:$0xff] %v1113
    %1178 = vst [vmem:[#allocation5 + $0x90] sm:$0xff] %v1114
    %1179 = vst [vmem:[#allocation5 + $0x98] sm:$0xff] %v1115
    %1180 = vst [vmem:[#allocation5 + $0xa0] sm:$0xff] %v1116
    %1181 = vst [vmem:[#allocation5 + $0xa8] sm:$0xff] %v1117
    %1182 = vst [vmem:[#allocation5 + $0xb0] sm:$0xff] %v1118
    %1183 = vst [vmem:[#allocation5 + $0xb8] sm:$0xff] %v1119
    %1184 = vst [vmem:[#allocation5 + $0xc0] sm:$0xff] %v1120
    %1185 = vst [vmem:[#allocation5 + $0xc8] sm:$0xff] %v1121
    %1186 = vst [vmem:[#allocation5 + $0xd0] sm:$0xff] %v1122
    %1187 = vst [vmem:[#allocation5 + $0xd8] sm:$0xff] %v1123
    %1188 = vst [vmem:[#allocation5 + $0xe0] sm:$0xff] %v1124
    %1189 = vst [vmem:[#allocation5 + $0xe8] sm:$0xff] %v1125
    %1190 = vst [vmem:[#allocation5 + $0xf0] sm:$0xff] %v1126
    %1191 = vst [vmem:[#allocation5 + $0xf8] sm:$0xff] %v1127
    %1192 = vst [vmem:[#allocation5 + $0x100] sm:$0xff] %v1128
    %1193 = vst [vmem:[#allocation5 + $0x108] sm:$0xff] %v1129
    %1194 = vst [vmem:[#allocation5 + $0x110] sm:$0xff] %v1130
    %1195 = vst [vmem:[#allocation5 + $0x118] sm:$0xff] %v1131
    %1196 = vst [vmem:[#allocation5 + $0x120] sm:$0xff] %v1132
    %1197 = vst [vmem:[#allocation5 + $0x128] sm:$0xff] %v1133
    %1198 = vst [vmem:[#allocation5 + $0x130] sm:$0xff] %v1134
    %1199 = vst [vmem:[#allocation5 + $0x138] sm:$0xff] %v1135
    %1200 = vst [vmem:[#allocation5 + $0x140] sm:$0xff] %v1136
    %1201 = vst [vmem:[#allocation5 + $0x148] sm:$0xff] %v1137
    %1202 = vst [vmem:[#allocation5 + $0x150] sm:$0xff] %v1138
    %1203 = vst [vmem:[#allocation5 + $0x158] sm:$0xff] %v1139
    %1204 = vst [vmem:[#allocation5 + $0x160] sm:$0xff] %v1140
    %1205 = vst [vmem:[#allocation5 + $0x168] sm:$0xff] %v1141
    %1206 = vst [vmem:[#allocation5 + $0x170] sm:$0xff] %v1142
    %1207 = vst [vmem:[#allocation5 + $0x178] sm:$0xff] %v1143
    %1208 = vst [vmem:[#allocation5 + $0x180] sm:$0xff] %v1144
    %1209 = vst [vmem:[#allocation5 + $0x188] sm:$0xff] %v1145
    %1210 = vst [vmem:[#allocation5 + $0x190] sm:$0xff] %v1146
    %1211 = vst [vmem:[#allocation5 + $0x198] sm:$0xff] %v1147
    %1212 = vst [vmem:[#allocation5 + $0x1a0] sm:$0xff] %v1148
    %1213 = vst [vmem:[#allocation5 + $0x1a8] sm:$0xff] %v1149
    %1214 = vst [vmem:[#allocation5 + $0x1b0] sm:$0xff] %v1150
    %1215 = vst [vmem:[#allocation5 + $0x1b8] sm:$0xff] %v1151
    %1216 = vst [vmem:[#allocation5 + $0x1c0] sm:$0xff] %v1152
    %1217 = vst [vmem:[#allocation5 + $0x1c8] sm:$0xff] %v1153
    %1218 = vst [vmem:[#allocation5 + $0x1d0] sm:$0xff] %v1154
    %1219 = vst [vmem:[#allocation5 + $0x1d8] sm:$0xff] %v1155
    %1220 = vst [vmem:[#allocation5 + $0x1e0] sm:$0xff] %v1156
    %1221 = vst [vmem:[#allocation5 + $0x1e8] sm:$0xff] %v1157
    %1222 = vst [vmem:[#allocation5 + $0x1f0] sm:$0xff] %v1158
    %1223 = vst [vmem:[#allocation5 + $0x1f8] sm:$0xff] %v1159
    // Predicated region
    $region26: #{tpu_custom_call.1} parent=1 // pred_check
      _
    $region27: #{tpu_custom_call.1} parent=1 // pred_check_branch
      %1225 = sbr.rel (0) target = $region29
    $region28: #{tpu_custom_call.1} parent=1 // pred_region
      %s1227 = ssub.s32 8192, 8192
      %1228 = vsyncadd [#allocation4], %s1227
      %s1229 = sshll.u32 [#allocation5], 4
      %s1230 = int_to_ptr.vmem [resolvable:$true] %s1229
      %1235 = dma.vmem_to_hbm [thread:$0]  %s1230, 8192, %s5, [#allocation4], 256, 256, 16
    $region29: #{tpu_custom_call.1} parent=1 // pred_fallthru
      _
    // Predicated region
    $region30: #{tpu_custom_call.1} parent=1 // pred_check
      _
    $region31: #{tpu_custom_call.1} parent=1 // pred_check_branch
      %1237 = sbr.rel (0) target = $region33
    $region32: #{tpu_custom_call.1} parent=1 // pred_region
      %1238 = dma.done [#allocation4], 8192
    $region33: #{tpu_custom_call.1} parent=1 // pred_fallthru
      _
    %1239 = vsyncpa [#allocation3], 1
    %1240 = vsyncpa [#allocation4], 1

</llo_original>
